<compile_context>
chip_gen: v7x
topology: tpu7x:2x2x1
jax: 0.10.0
libtpu: 0.0.40
codegen_flags: <defaults>
</compile_context>

<pallas_src>
import functools

import jax
import jax.numpy as jnp
from jax import lax
from jax.experimental import pallas as pl
from jax.experimental.pallas import tpu as pltpu


def _round_up(x: int, m: int) -> int:
    return ((x + m - 1) // m) * m


def _gbp_kernel(tgt_ref, x_ref, w1t_ref, w1_ref, b1_ref, w2t_ref, w2_ref,
                b2_ref, grad_ref, *, num_classes: int, inv_batch: float):
    # x tile stays f32 in HBM/VMEM (no extra host cast pass); cast to bf16 in
    # registers so the MXU runs at bf16 rate with f32 accumulation.
    xb = x_ref[...].astype(jnp.bfloat16)                  # (TB, Dp)
    tgt = tgt_ref[...]                                    # (TB, 1) int32

    # ---- backbone forward: Linear -> ReLU -> Linear (natural MXU layouts) ----
    z1 = jnp.dot(xb, w1t_ref[...],
                 preferred_element_type=jnp.float32) + b1_ref[...]       # (TB, Hp) f32
    a1 = jnp.maximum(z1, 0.0)
    logits = jnp.dot(a1.astype(jnp.bfloat16), w2t_ref[...],
                     preferred_element_type=jnp.float32) + b2_ref[...]   # (TB, Kp) f32

    # ---- mask padded class columns + CrossEntropyLoss(mean) gradient (f32) ----
    class_ids = lax.broadcasted_iota(jnp.int32, logits.shape, 1)
    logits = jnp.where(class_ids < num_classes, logits, -1e30)
    m = jnp.max(logits, axis=-1, keepdims=True)
    e = jnp.exp(logits - m)
    p = e * pl.reciprocal(jnp.sum(e, axis=-1, keepdims=True), approx=True)
    onehot = (class_ids == tgt).astype(jnp.float32)       # in-kernel one-hot
    g_logits = (p - onehot) * inv_batch                   # (TB, Kp)

    # ---- backward through second Linear ----
    g_a1 = jnp.dot(g_logits.astype(jnp.bfloat16), w2_ref[...],
                   preferred_element_type=jnp.float32)    # (TB, Hp)

    # ---- guided backprop through ReLU: gate by forward sign, clamp grad >= 0 ----
    g_z1 = jnp.where(z1 > 0.0, jnp.maximum(g_a1, 0.0), 0.0)

    # ---- backward through first Linear -> d(loss)/d(x) ----
    grad_ref[...] = jnp.dot(g_z1.astype(jnp.bfloat16), w1_ref[...],
                            preferred_element_type=jnp.float32)          # (TB, Dp)


def _pick_batch_tile(B: int) -> int:
    if B <= 8:
        return _round_up(B, 8)
    # Aim for >=2 grid steps (v7x megacore), cap at 256 (big, lane-dense tiles).
    tb = min(256, _round_up(pl.cdiv(B, 2), 8))
    # Prefer a multiple-of-8 divisor of B so the batch dim needs no padding copy.
    cand = tb
    while cand >= 8 and B % cand != 0:
        cand -= 8
    return cand if cand >= 8 else tb


def gbp_input_gradient(x_nchw, target, w1, b1, w2, b2, *, batch_tile=None):
    """Returns d(CE-loss)/d(x) under guided backprop. Shape/dtype match x_nchw."""
    B, C, H, W = x_nchw.shape
    D = C * H * W
    HID = w1.shape[0]
    K = w2.shape[0]

    Dp = _round_up(D, 128)
    Hp = _round_up(HID, 128)
    Kp = _round_up(K, 128)
    TB = batch_tile if batch_tile is not None else _pick_batch_tile(B)
    Bp = _round_up(B, TB)

    f32, bf16 = jnp.float32, jnp.bfloat16

    # x: pass straight through (free reshape) unless padding is unavoidable.
    x_flat = x_nchw.reshape(B, D).astype(f32)
    if Bp != B or Dp != D:
        x_in = jnp.pad(x_flat, ((0, Bp - B), (0, Dp - D)))
    else:
        x_in = x_flat

    # Weights stored bf16, both orientations (tiny, DMA'd once, avoids in-kernel
    # XLU transposes). Biases stay f32 (added to f32 accumulators).
    w1_p = jnp.zeros((Hp, Dp), bf16).at[:HID, :D].set(w1.astype(bf16))
    w1t_p = w1_p.T                                        # (Dp, Hp)
    w2_p = jnp.zeros((Kp, Hp), bf16).at[:K, :HID].set(w2.astype(bf16))
    w2t_p = w2_p.T                                        # (Hp, Kp)
    b1_p = jnp.zeros((1, Hp), f32).at[0, :HID].set(b1.astype(f32))
    b2_p = jnp.zeros((1, Kp), f32).at[0, :K].set(b2.astype(f32))

    # Padded batch rows: target = -1 (no class -> zero one-hot); their grad rows
    # are garbage but sliced off below, so they never affect real samples.
    tgt_in = jnp.full((Bp, 1), -1, jnp.int32).at[:B, 0].set(target.astype(jnp.int32))

    kernel = functools.partial(_gbp_kernel, num_classes=K, inv_batch=1.0 / B)

    # Explicit scoped-VMEM budget (covers v5e 16 MiB / v6e 32 MiB defaults,
    # stays well under v7x's 64 MiB physical).
    io_bytes = 2 * 2 * TB * Dp * 4                       # x + grad tiles, 2x buffered, f32
    wt_bytes = 2 * 2 * (Hp * Dp + Kp * Hp) * 2           # both orientations, 2x buffered, bf16
    misc_bytes = 8 * TB * (Hp + Kp) * 4                  # intermediates / biases headroom
    vmem_limit = int(min(max(2 * (io_bytes + wt_bytes + misc_bytes), 32 << 20),
                         56 << 20))

    grad_p = pl.pallas_call(
        kernel,
        out_shape=jax.ShapeDtypeStruct((Bp, Dp), f32),
        grid=(Bp // TB,),
        in_specs=[
            pl.BlockSpec((TB, 1), lambda i: (i, 0)),     # targets (per batch tile)
            pl.BlockSpec((TB, Dp), lambda i: (i, 0)),    # x tile
            pl.BlockSpec((Dp, Hp), lambda i: (0, 0)),    # w1^T (forward, VMEM-resident)
            pl.BlockSpec((Hp, Dp), lambda i: (0, 0)),    # w1   (backward, VMEM-resident)
            pl.BlockSpec((1, Hp), lambda i: (0, 0)),     # b1
            pl.BlockSpec((Hp, Kp), lambda i: (0, 0)),    # w2^T (forward)
            pl.BlockSpec((Kp, Hp), lambda i: (0, 0)),    # w2   (backward)
            pl.BlockSpec((1, Kp), lambda i: (0, 0)),     # b2
        ],
        out_specs=pl.BlockSpec((TB, Dp), lambda i: (i, 0)),
        compiler_params=pltpu.CompilerParams(
            dimension_semantics=("parallel",),
            vmem_limit_bytes=vmem_limit),
    )(tgt_in, x_in, w1t_p, w1_p, b1_p, w2t_p, w2_p, b2_p)

    return grad_p[:B, :D].reshape(B, C, H, W)


def _reference(x_nchw, target, w1, b1, w2, b2):
    """Pure-JAX reference with matching bf16-operand / f32-accumulate precision."""
    B = x_nchw.shape[0]
    K = w2.shape[0]
    bf = jnp.bfloat16
    x = x_nchw.reshape(B, -1).astype(bf)
    w1b, w2b = w1.astype(bf), w2.astype(bf)
    z1 = jnp.dot(x, w1b.T, preferred_element_type=jnp.float32) + b1
    a1 = jnp.maximum(z1, 0.0)
    logits = jnp.dot(a1.astype(bf), w2b.T, preferred_element_type=jnp.float32) + b2
    p = jax.nn.softmax(logits, axis=-1)
    y = jax.nn.one_hot(target, K, dtype=jnp.float32)
    g_logits = (p - y) / B
    g_a1 = jnp.dot(g_logits.astype(bf), w2b, preferred_element_type=jnp.float32)
    g_z1 = jnp.where(z1 > 0.0, jnp.maximum(g_a1, 0.0), 0.0)
    g_x = jnp.dot(g_z1.astype(bf), w1b, preferred_element_type=jnp.float32)
    return g_x.reshape(x_nchw.shape)


if __name__ == "__main__":
    # Small shapes consistent with the module's forward (image batch + labels).
    B, C, H, W = 2, 4, 16, 16
    D = C * H * W           # 1024
    HID = 32
    NUM_CLASSES = 10

    key = jax.random.PRNGKey(0)
    kx, kt, k1, k2, k3, k4 = jax.random.split(key, 6)

    x = jax.random.normal(kx, (B, C, H, W), dtype=jnp.float32)
    target = jax.random.randint(kt, (B,), 0, NUM_CLASSES)

    # Deterministic parameter init (PyTorch-Linear-style uniform bounds).
    bound1 = 1.0 / jnp.sqrt(D)
    w1 = jax.random.uniform(k1, (HID, D), jnp.float32, -bound1, bound1)
    b1 = jax.random.uniform(k2, (HID,), jnp.float32, -bound1, bound1)
    bound2 = 1.0 / jnp.sqrt(HID)
    w2 = jax.random.uniform(k3, (NUM_CLASSES, HID), jnp.float32, -bound2, bound2)
    b2 = jax.random.uniform(k4, (NUM_CLASSES,), jnp.float32, -bound2, bound2)

    grad = gbp_input_gradient(x, target, w1, b1, w2, b2)
    grad = jax.block_until_ready(grad)

    ref = _reference(x, target, w1, b1, w2, b2)
    assert grad.shape == x.shape
    # bf16 MXU operands + approx reciprocal -> loosened tolerance vs. the
    # precision-matched reference.
    assert jnp.allclose(grad, ref, atol=1e-4, rtol=2e-2), "mismatch vs reference"

    # TODO(synk): GBP accepts an arbitrary backbone; autograd over a generic
    # user-supplied nn.Module has no single Pallas equivalent, so a concrete
    # Linear-ReLU-Linear backbone is instantiated and differentiated by hand.
    print("KERNEL_OK")
</pallas_src>

<mosaic_0001>
module attributes {stable_mosaic.version = 11 : i64} {
  func.func @_gbp_kernel(%arg0: i32, %arg1: memref<8x1xi32, #tpu.memory_space<vmem>>, %arg2: memref<8x1024xf32, #tpu.memory_space<vmem>>, %arg3: memref<1024x128xbf16, #tpu.memory_space<vmem>>, %arg4: memref<128x1024xbf16, #tpu.memory_space<vmem>>, %arg5: memref<1x128xf32, #tpu.memory_space<vmem>>, %arg6: memref<128x128xbf16, #tpu.memory_space<vmem>>, %arg7: memref<128x128xbf16, #tpu.memory_space<vmem>>, %arg8: memref<1x128xf32, #tpu.memory_space<vmem>>, %arg9: memref<8x1024xf32, #tpu.memory_space<vmem>>) attributes {dimension_semantics = [#tpu.dimension_semantics<parallel>], iteration_bounds = array<i64: 1>, scalar_prefetch = 0 : i64, scratch_operands = 0 : i64, tpu.core_type = #tpu.core_type<tc>, window_params = [{transform_indices = @transform_0, window_bounds = array<i64: 8, 1>}, {transform_indices = @transform_1, window_bounds = array<i64: 8, 1024>}, {pipeline_mode = #tpu.pipeline_mode<synchronous>, transform_indices = @transform_2, window_bounds = array<i64: 1024, 128>}, {pipeline_mode = #tpu.pipeline_mode<synchronous>, transform_indices = @transform_3, window_bounds = array<i64: 128, 1024>}, {pipeline_mode = #tpu.pipeline_mode<synchronous>, transform_indices = @transform_4, window_bounds = array<i64: 1, 128>}, {pipeline_mode = #tpu.pipeline_mode<synchronous>, transform_indices = @transform_5, window_bounds = array<i64: 128, 128>}, {pipeline_mode = #tpu.pipeline_mode<synchronous>, transform_indices = @transform_6, window_bounds = array<i64: 128, 128>}, {pipeline_mode = #tpu.pipeline_mode<synchronous>, transform_indices = @transform_7, window_bounds = array<i64: 1, 128>}, {transform_indices = @transform_8, window_bounds = array<i64: 8, 1024>}]} {
    %c0 = arith.constant 0 : index
    %c0_0 = arith.constant 0 : index
    %0 = vector.load %arg2[%c0, %c0_0] : memref<8x1024xf32, #tpu.memory_space<vmem>>, vector<8x1024xf32>
    %1 = arith.truncf %0 : vector<8x1024xf32> to vector<8x1024xbf16>
    %c0_1 = arith.constant 0 : index
    %c0_2 = arith.constant 0 : index
    %2 = vector.load %arg1[%c0_1, %c0_2] : memref<8x1xi32, #tpu.memory_space<vmem>>, vector<8x1xi32>
    %c0_3 = arith.constant 0 : index
    %c0_4 = arith.constant 0 : index
    %3 = vector.load %arg3[%c0_3, %c0_4] : memref<1024x128xbf16, #tpu.memory_space<vmem>>, vector<1024x128xbf16>
    %cst = arith.constant dense<0.000000e+00> : vector<8x128xf32>
    %4 = tpu.matmul %1, %3, %cst {dimension_numbers = #tpu.dot_dimension_numbers<[1], [0], [0], [1], [0, 0, 1, 1], [], []>} : vector<8x1024xbf16>, vector<1024x128xbf16>, vector<8x128xf32> -> vector<8x128xf32>
    %c0_5 = arith.constant 0 : index
    %c0_6 = arith.constant 0 : index
    %5 = vector.load %arg5[%c0_5, %c0_6] : memref<1x128xf32, #tpu.memory_space<vmem>>, vector<1x128xf32>
    %6 = vector.broadcast %5 : vector<1x128xf32> to vector<8x128xf32>
    %7 = arith.addf %4, %6 : vector<8x128xf32>
    %cst_7 = arith.constant 0.000000e+00 : f32
    %8 = vector.broadcast %cst_7 : f32 to vector<8x128xf32>
    %9 = arith.maximumf %7, %8 : vector<8x128xf32>
    %10 = arith.truncf %9 : vector<8x128xf32> to vector<8x128xbf16>
    %c0_8 = arith.constant 0 : index
    %c0_9 = arith.constant 0 : index
    %11 = vector.load %arg6[%c0_8, %c0_9] : memref<128x128xbf16, #tpu.memory_space<vmem>>, vector<128x128xbf16>
    %cst_10 = arith.constant dense<0.000000e+00> : vector<8x128xf32>
    %12 = tpu.matmul %10, %11, %cst_10 {dimension_numbers = #tpu.dot_dimension_numbers<[1], [0], [0], [1], [0, 0, 1, 1], [], []>} : vector<8x128xbf16>, vector<128x128xbf16>, vector<8x128xf32> -> vector<8x128xf32>
    %c0_11 = arith.constant 0 : index
    %c0_12 = arith.constant 0 : index
    %13 = vector.load %arg8[%c0_11, %c0_12] : memref<1x128xf32, #tpu.memory_space<vmem>>, vector<1x128xf32>
    %14 = vector.broadcast %13 : vector<1x128xf32> to vector<8x128xf32>
    %15 = arith.addf %12, %14 : vector<8x128xf32>
    %16 = tpu.iota {dimensions = array<i32: 1>} : vector<8x128xi32>
    %c10_i32 = arith.constant 10 : i32
    %17 = vector.broadcast %c10_i32 : i32 to vector<8x128xi32>
    %18 = arith.cmpi slt, %16, %17 : vector<8x128xi32>
    %cst_13 = arith.constant -1.000000e+30 : f32
    %19 = vector.broadcast %cst_13 : f32 to vector<8x128xf32>
    %20 = arith.select %18, %15, %19 : vector<8x128xi1>, vector<8x128xf32>
    %cst_14 = arith.constant dense<0xFF800000> : vector<8xf32>
    %21 = vector.multi_reduction <maximumf>, %20, %cst_14 [1] : vector<8x128xf32> to vector<8xf32>
    %22 = vector.shape_cast %21 : vector<8xf32> to vector<8x1xf32>
    %23 = vector.broadcast %22 : vector<8x1xf32> to vector<8x128xf32>
    %24 = arith.subf %20, %23 : vector<8x128xf32>
    %25 = math.exp %24 : vector<8x128xf32>
    %cst_15 = arith.constant dense<0.000000e+00> : vector<8xf32>
    %26 = vector.multi_reduction <add>, %25, %cst_15 [1] : vector<8x128xf32> to vector<8xf32>
    %27 = vector.shape_cast %26 : vector<8xf32> to vector<8x1xf32>
    %28 = tpu.reciprocal %27 {approx = true} : vector<8x1xf32> -> vector<8x1xf32>
    %29 = vector.broadcast %28 : vector<8x1xf32> to vector<8x128xf32>
    %30 = arith.mulf %25, %29 : vector<8x128xf32>
    %31 = vector.broadcast %2 : vector<8x1xi32> to vector<8x128xi32>
    %32 = arith.cmpi eq, %16, %31 : vector<8x128xi32>
    %33 = arith.extui %32 : vector<8x128xi1> to vector<8x128xi32>
    %34 = arith.sitofp %33 : vector<8x128xi32> to vector<8x128xf32>
    %35 = arith.subf %30, %34 : vector<8x128xf32>
    %cst_16 = arith.constant 5.000000e-01 : f32
    %36 = vector.broadcast %cst_16 : f32 to vector<8x128xf32>
    %37 = arith.mulf %35, %36 : vector<8x128xf32>
    %38 = arith.truncf %37 : vector<8x128xf32> to vector<8x128xbf16>
    %c0_17 = arith.constant 0 : index
    %c0_18 = arith.constant 0 : index
    %39 = vector.load %arg7[%c0_17, %c0_18] : memref<128x128xbf16, #tpu.memory_space<vmem>>, vector<128x128xbf16>
    %cst_19 = arith.constant dense<0.000000e+00> : vector<8x128xf32>
    %40 = tpu.matmul %38, %39, %cst_19 {dimension_numbers = #tpu.dot_dimension_numbers<[1], [0], [0], [1], [0, 0, 1, 1], [], []>} : vector<8x128xbf16>, vector<128x128xbf16>, vector<8x128xf32> -> vector<8x128xf32>
    %cst_20 = arith.constant 0.000000e+00 : f32
    %41 = vector.broadcast %cst_20 : f32 to vector<8x128xf32>
    %42 = arith.cmpf ogt, %7, %41 : vector<8x128xf32>
    %cst_21 = arith.constant 0.000000e+00 : f32
    %43 = vector.broadcast %cst_21 : f32 to vector<8x128xf32>
    %44 = arith.maximumf %40, %43 : vector<8x128xf32>
    %cst_22 = arith.constant 0.000000e+00 : f32
    %45 = vector.broadcast %cst_22 : f32 to vector<8x128xf32>
    %46 = arith.select %42, %44, %45 : vector<8x128xi1>, vector<8x128xf32>
    %47 = arith.truncf %46 : vector<8x128xf32> to vector<8x128xbf16>
    %c0_23 = arith.constant 0 : index
    %c0_24 = arith.constant 0 : index
    %48 = vector.load %arg4[%c0_23, %c0_24] : memref<128x1024xbf16, #tpu.memory_space<vmem>>, vector<128x1024xbf16>
    %cst_25 = arith.constant dense<0.000000e+00> : vector<8x1024xf32>
    %49 = tpu.matmul %47, %48, %cst_25 {dimension_numbers = #tpu.dot_dimension_numbers<[1], [0], [0], [1], [0, 0, 1, 1], [], []>} : vector<8x128xbf16>, vector<128x1024xbf16>, vector<8x1024xf32> -> vector<8x1024xf32>
    %c0_26 = arith.constant 0 : index
    %c0_27 = arith.constant 0 : index
    %50 = vector.load %arg9[%c0_26, %c0_27] : memref<8x1024xf32, #tpu.memory_space<vmem>>, vector<8x1024xf32>
    tpu.vector_store %arg9[%c0_26, %c0_27], %49 {strides = array<i32>} : memref<8x1024xf32, #tpu.memory_space<vmem>>, vector<8x1024xf32>,
    return
  }
  func.func @transform_0(%arg0: i32) -> (i32, i32) {
    %c0_i32 = arith.constant 0 : i32
    %c0_i32_0 = arith.constant 0 : i32
    return %arg0, %c0_i32 : i32, i32
  }
  func.func @transform_1(%arg0: i32) -> (i32, i32) {
    %c0_i32 = arith.constant 0 : i32
    %c0_i32_0 = arith.constant 0 : i32
    return %arg0, %c0_i32 : i32, i32
  }
  func.func @transform_2(%arg0: i32) -> (i32, i32) {
    %c0_i32 = arith.constant 0 : i32
    %c0_i32_0 = arith.constant 0 : i32
    %c0_i32_1 = arith.constant 0 : i32
    return %c0_i32, %c0_i32_0 : i32, i32
  }
  func.func @transform_3(%arg0: i32) -> (i32, i32) {
    %c0_i32 = arith.constant 0 : i32
    %c0_i32_0 = arith.constant 0 : i32
    %c0_i32_1 = arith.constant 0 : i32
    return %c0_i32, %c0_i32_0 : i32, i32
  }
  func.func @transform_4(%arg0: i32) -> (i32, i32) {
    %c0_i32 = arith.constant 0 : i32
    %c0_i32_0 = arith.constant 0 : i32
    %c0_i32_1 = arith.constant 0 : i32
    return %c0_i32, %c0_i32_0 : i32, i32
  }
  func.func @transform_5(%arg0: i32) -> (i32, i32) {
    %c0_i32 = arith.constant 0 : i32
    %c0_i32_0 = arith.constant 0 : i32
    %c0_i32_1 = arith.constant 0 : i32
    return %c0_i32, %c0_i32_0 : i32, i32
  }
  func.func @transform_6(%arg0: i32) -> (i32, i32) {
    %c0_i32 = arith.constant 0 : i32
    %c0_i32_0 = arith.constant 0 : i32
    %c0_i32_1 = arith.constant 0 : i32
    return %c0_i32, %c0_i32_0 : i32, i32
  }
  func.func @transform_7(%arg0: i32) -> (i32, i32) {
    %c0_i32 = arith.constant 0 : i32
    %c0_i32_0 = arith.constant 0 : i32
    %c0_i32_1 = arith.constant 0 : i32
    return %c0_i32, %c0_i32_0 : i32, i32
  }
  func.func @transform_8(%arg0: i32) -> (i32, i32) {
    %c0_i32 = arith.constant 0 : i32
    %c0_i32_0 = arith.constant 0 : i32
    return %arg0, %c0_i32 : i32, i32
  }
}

</mosaic_0001>

<llo_original>
// kernel: tpu_custom_call.1
$region0: #{tpu_custom_call.1}
  #allocation0 [shape = 'u32[]', space=smem, size = 0x4, offset = 0x4, fixed_abs, tag = 'smem constant byte address 0x4 - core index']
  #allocation1 [shape = 'u32[144,128]{1,0:T(1,128)}', space=vmem, size = 0x12000, scoped, tag = 'internal scratch']
  %s0 = inlined_call_operand.vmem [shape: s32[8,1], index: 0, kind: input, shape index: {}]
  %s1 = inlined_call_operand.hbm [shape: f32[8,1024], index: 1, kind: input, shape index: {}]
  %s2 = inlined_call_operand.hbm [shape: bf16[1024,128], index: 2, kind: input, shape index: {}]
  %s3 = inlined_call_operand.hbm [shape: bf16[128,1024], index: 3, kind: input, shape index: {}]
  %s4 = inlined_call_operand.vmem [shape: f32[1,128], index: 4, kind: input, shape index: {}]
  %s5 = inlined_call_operand.hbm [shape: bf16[128,128], index: 5, kind: input, shape index: {}]
  %s6 = inlined_call_operand.hbm [shape: bf16[128,128], index: 6, kind: input, shape index: {}]
  %s7 = inlined_call_operand.vmem [shape: f32[1,128], index: 7, kind: input, shape index: {}]
  %s8 = inlined_call_operand.hbm [shape: f32[8,1024], index: 8, kind: output, shape index: {}]
  %s9 = sld [smem:[#allocation0]]
  $region62: #{tpu_custom_call.1} parent=0
    _
  %s11 = ssub.s32 1, %s9
  %s12 = scalar_select 0, %s11, %s9
  $region1: #{tpu_custom_call.1} parent=0
    #allocation2 [shape = 'u8[32768]{0}', space=vmem, size = 0x8000, scoped, tag = 'input window, operand 1, single buffered']
    #allocation3 [shape = 's32[1]{0}', space=sflag, size = 0x4, scoped, tag = 'scoped memory for tpu_custom_call.1']
    #allocation4 [shape = 's32[1]{0}', space=sflag, size = 0x4, scoped, tag = 'scoped memory for tpu_custom_call.1']
    #allocation5 [shape = 'u8[262144]{0}', space=vmem, size = 0x40000, scoped, tag = 'input window, operand 2, single buffered']
    #allocation6 [shape = 's32[1]{0}', space=sflag, size = 0x4, scoped, tag = 'scoped memory for tpu_custom_call.1']
    #allocation7 [shape = 'u8[262144]{0}', space=vmem, size = 0x40000, scoped, tag = 'input window, operand 3, single buffered']
    #allocation8 [shape = 'u8[32768]{0}', space=vmem, size = 0x8000, scoped, tag = 'input window, operand 5, single buffered']
    #allocation9 [shape = 's32[1]{0}', space=sflag, size = 0x4, scoped, tag = 'scoped memory for tpu_custom_call.1']
    #allocation10 [shape = 'u8[32768]{0}', space=vmem, size = 0x8000, scoped, tag = 'input window, operand 6, single buffered']
    #allocation11 [shape = 'u8[32768]{0}', space=vmem, size = 0x8000, scoped, tag = 'output window, operand 0, single buffered']
    %13 = vsyncpa [#allocation3], 0
    %14 = vsyncpa [#allocation6], 0
    %15 = vsyncpa [#allocation9], 0
    %16 = vsyncpa [#allocation4], 0
    // Predicated region
    $region2: #{tpu_custom_call.1} parent=1 // pred_check
      _
    $region3: #{tpu_custom_call.1} parent=1 // pred_check_branch
      %18 = sbr.rel (0) target = $region5
    $region4: #{tpu_custom_call.1} parent=1 // pred_region
      _
    $region5: #{tpu_custom_call.1} parent=1 // pred_fallthru
      _
    // Predicated region
    $region6: #{tpu_custom_call.1} parent=1 // pred_check
      _
    $region7: #{tpu_custom_call.1} parent=1 // pred_check_branch
      %20 = sbr.rel (0) target = $region9
    $region8: #{tpu_custom_call.1} parent=1 // pred_region
      %s22 = ssub.s32 1024, 1024
      %23 = vsyncadd [#allocation3], %s22
      %s25 = sshll.u32 [#allocation2], 4
      %s26 = int_to_ptr.vmem [resolvable:$true] %s25
      %28 = dma.hbm_to_vmem [thread:$0]  %s1, 1024, %s26, [#allocation3]
    $region9: #{tpu_custom_call.1} parent=1 // pred_fallthru
      _
    // Predicated region
    $region10: #{tpu_custom_call.1} parent=1 // pred_check
      _
    $region11: #{tpu_custom_call.1} parent=1 // pred_check_branch
      %30 = sbr.rel (0) target = $region13
    $region12: #{tpu_custom_call.1} parent=1 // pred_region
      %s32 = ssub.s32 8192, 8192
      %33 = vsyncadd [#allocation6], %s32
      %s34 = sshll.u32 [#allocation5], 4
      %s35 = int_to_ptr.vmem [resolvable:$true] %s34
      %40 = dma.hbm_to_vmem [thread:$0]  %s2, 8192, %s35, [#allocation6], 64, 64, 4
    $region13: #{tpu_custom_call.1} parent=1 // pred_fallthru
      _
    // Predicated region
    $region14: #{tpu_custom_call.1} parent=1 // pred_check
      _
    $region15: #{tpu_custom_call.1} parent=1 // pred_check_branch
      %42 = sbr.rel (0) target = $region17
    $region16: #{tpu_custom_call.1} parent=1 // pred_region
      %s44 = ssub.s32 8192, 8192
      %45 = vsyncadd [#allocation6], %s44
      %s46 = sshll.u32 [#allocation7], 4
      %s47 = int_to_ptr.vmem [resolvable:$true] %s46
      %52 = dma.hbm_to_vmem [thread:$0]  %s3, 8192, %s47, [#allocation6], 512, 512, 32
    $region17: #{tpu_custom_call.1} parent=1 // pred_fallthru
      _
    // Predicated region
    $region18: #{tpu_custom_call.1} parent=1 // pred_check
      _
    $region19: #{tpu_custom_call.1} parent=1 // pred_check_branch
      %54 = sbr.rel (0) target = $region21
    $region20: #{tpu_custom_call.1} parent=1 // pred_region
      _
    $region21: #{tpu_custom_call.1} parent=1 // pred_fallthru
      _
    // Predicated region
    $region22: #{tpu_custom_call.1} parent=1 // pred_check
      _
    $region23: #{tpu_custom_call.1} parent=1 // pred_check_branch
      %56 = sbr.rel (0) target = $region25
    $region24: #{tpu_custom_call.1} parent=1 // pred_region
      %s58 = ssub.s32 1024, 1024
      %59 = vsyncadd [#allocation9], %s58
      %s60 = sshll.u32 [#allocation8], 4
      %s61 = int_to_ptr.vmem [resolvable:$true] %s60
      %66 = dma.hbm_to_vmem [thread:$0]  %s5, 1024, %s61, [#allocation9], 64, 64, 4
    $region25: #{tpu_custom_call.1} parent=1 // pred_fallthru
      _
    // Predicated region
    $region26: #{tpu_custom_call.1} parent=1 // pred_check
      _
    $region27: #{tpu_custom_call.1} parent=1 // pred_check_branch
      %68 = sbr.rel (0) target = $region29
    $region28: #{tpu_custom_call.1} parent=1 // pred_region
      %s70 = ssub.s32 1024, 1024
      %71 = vsyncadd [#allocation9], %s70
      %s72 = sshll.u32 [#allocation10], 4
      %s73 = int_to_ptr.vmem [resolvable:$true] %s72
      %78 = dma.hbm_to_vmem [thread:$0]  %s6, 1024, %s73, [#allocation9], 64, 64, 4
    $region29: #{tpu_custom_call.1} parent=1 // pred_fallthru
      _
    // Predicated region
    $region30: #{tpu_custom_call.1} parent=1 // pred_check
      _
    $region31: #{tpu_custom_call.1} parent=1 // pred_check_branch
      %80 = sbr.rel (0) target = $region33
    $region32: #{tpu_custom_call.1} parent=1 // pred_region
      _
    $region33: #{tpu_custom_call.1} parent=1 // pred_fallthru
      _
    // Predicated region
    $region34: #{tpu_custom_call.1} parent=1 // pred_check
      _
    $region35: #{tpu_custom_call.1} parent=1 // pred_check_branch
      %82 = sbr.rel (0) target = $region37
    $region36: #{tpu_custom_call.1} parent=1 // pred_region
      %83 = dma.done [#allocation3], 1024
    $region37: #{tpu_custom_call.1} parent=1 // pred_fallthru
      _
    // Predicated region
    $region38: #{tpu_custom_call.1} parent=1 // pred_check
      _
    $region39: #{tpu_custom_call.1} parent=1 // pred_check_branch
      %85 = sbr.rel (0) target = $region41
    $region40: #{tpu_custom_call.1} parent=1 // pred_region
      %86 = dma.done [#allocation6], 8192
    $region41: #{tpu_custom_call.1} parent=1 // pred_fallthru
      _
    // Predicated region
    $region42: #{tpu_custom_call.1} parent=1 // pred_check
      _
    $region43: #{tpu_custom_call.1} parent=1 // pred_check_branch
      %88 = sbr.rel (0) target = $region45
    $region44: #{tpu_custom_call.1} parent=1 // pred_region
      %89 = dma.done [#allocation6], 8192
    $region45: #{tpu_custom_call.1} parent=1 // pred_fallthru
      _
    // Predicated region
    $region46: #{tpu_custom_call.1} parent=1 // pred_check
      _
    $region47: #{tpu_custom_call.1} parent=1 // pred_check_branch
      %91 = sbr.rel (0) target = $region49
    $region48: #{tpu_custom_call.1} parent=1 // pred_region
      %92 = dma.done [#allocation9], 1024
    $region49: #{tpu_custom_call.1} parent=1 // pred_fallthru
      _
    // Predicated region
    $region50: #{tpu_custom_call.1} parent=1 // pred_check
      _
    $region51: #{tpu_custom_call.1} parent=1 // pred_check_branch
      %94 = sbr.rel (0) target = $region53
    $region52: #{tpu_custom_call.1} parent=1 // pred_region
      %95 = dma.done [#allocation9], 1024
    $region53: #{tpu_custom_call.1} parent=1 // pred_fallthru
      _
    %v97 = vld [vmem:[#allocation2] sm:$0xff]
    %v98 = vld [vmem:[#allocation2 + $0x8] sm:$0xff]
    %v99 = vld [vmem:[#allocation2 + $0x10] sm:$0xff]
    %v100 = vld [vmem:[#allocation2 + $0x18] sm:$0xff]
    %v101 = vld [vmem:[#allocation2 + $0x20] sm:$0xff]
    %v102 = vld [vmem:[#allocation2 + $0x28] sm:$0xff]
    %v103 = vld [vmem:[#allocation2 + $0x30] sm:$0xff]
    %v104 = vld [vmem:[#allocation2 + $0x38] sm:$0xff]
    %v105 = vpack.c.bf16 %v97, %v97
    %v106 = vpack.c.bf16 %v98, %v98
    %v107 = vpack.c.bf16 %v99, %v99
    %v108 = vpack.c.bf16 %v100, %v100
    %v109 = vpack.c.bf16 %v101, %v101
    %v110 = vpack.c.bf16 %v102, %v102
    %v111 = vpack.c.bf16 %v103, %v103
    %v112 = vpack.c.bf16 %v104, %v104
    %v113 = vld [vmem:[%s0] sm:$0xff]
    %v114 = vld [vmem:[#allocation5] sm:$0xf]
    %v115 = vld [vmem:[#allocation5 + $0x4] sm:$0xf]
    %v116 = vld [vmem:[#allocation5 + $0x8] sm:$0xf]
    %v117 = vld [vmem:[#allocation5 + $0xc] sm:$0xf]
    %v118 = vld [vmem:[#allocation5 + $0x10] sm:$0xf]
    %v119 = vld [vmem:[#allocation5 + $0x14] sm:$0xf]
    %v120 = vld [vmem:[#allocation5 + $0x18] sm:$0xf]
    %v121 = vld [vmem:[#allocation5 + $0x1c] sm:$0xf]
    %v122 = vld [vmem:[#allocation5 + $0x20] sm:$0xf]
    %v123 = vld [vmem:[#allocation5 + $0x24] sm:$0xf]
    %v124 = vld [vmem:[#allocation5 + $0x28] sm:$0xf]
    %v125 = vld [vmem:[#allocation5 + $0x2c] sm:$0xf]
    %v126 = vld [vmem:[#allocation5 + $0x30] sm:$0xf]
    %v127 = vld [vmem:[#allocation5 + $0x34] sm:$0xf]
    %v128 = vld [vmem:[#allocation5 + $0x38] sm:$0xf]
    %v129 = vld [vmem:[#allocation5 + $0x3c] sm:$0xf]
    %v130 = vld [vmem:[#allocation5 + $0x40] sm:$0xf]
    %v131 = vld [vmem:[#allocation5 + $0x44] sm:$0xf]
    %v132 = vld [vmem:[#allocation5 + $0x48] sm:$0xf]
    %v133 = vld [vmem:[#allocation5 + $0x4c] sm:$0xf]
    %v134 = vld [vmem:[#allocation5 + $0x50] sm:$0xf]
    %v135 = vld [vmem:[#allocation5 + $0x54] sm:$0xf]
    %v136 = vld [vmem:[#allocation5 + $0x58] sm:$0xf]
    %v137 = vld [vmem:[#allocation5 + $0x5c] sm:$0xf]
    %v138 = vld [vmem:[#allocation5 + $0x60] sm:$0xf]
    %v139 = vld [vmem:[#allocation5 + $0x64] sm:$0xf]
    %v140 = vld [vmem:[#allocation5 + $0x68] sm:$0xf]
    %v141 = vld [vmem:[#allocation5 + $0x6c] sm:$0xf]
    %v142 = vld [vmem:[#allocation5 + $0x70] sm:$0xf]
    %v143 = vld [vmem:[#allocation5 + $0x74] sm:$0xf]
    %v144 = vld [vmem:[#allocation5 + $0x78] sm:$0xf]
    %v145 = vld [vmem:[#allocation5 + $0x7c] sm:$0xf]
    %v146 = vld [vmem:[#allocation5 + $0x80] sm:$0xf]
    %v147 = vld [vmem:[#allocation5 + $0x84] sm:$0xf]
    %v148 = vld [vmem:[#allocation5 + $0x88] sm:$0xf]
    %v149 = vld [vmem:[#allocation5 + $0x8c] sm:$0xf]
    %v150 = vld [vmem:[#allocation5 + $0x90] sm:$0xf]
    %v151 = vld [vmem:[#allocation5 + $0x94] sm:$0xf]
    %v152 = vld [vmem:[#allocation5 + $0x98] sm:$0xf]
    %v153 = vld [vmem:[#allocation5 + $0x9c] sm:$0xf]
    %v154 = vld [vmem:[#allocation5 + $0xa0] sm:$0xf]
    %v155 = vld [vmem:[#allocation5 + $0xa4] sm:$0xf]
    %v156 = vld [vmem:[#allocation5 + $0xa8] sm:$0xf]
    %v157 = vld [vmem:[#allocation5 + $0xac] sm:$0xf]
    %v158 = vld [vmem:[#allocation5 + $0xb0] sm:$0xf]
    %v159 = vld [vmem:[#allocation5 + $0xb4] sm:$0xf]
    %v160 = vld [vmem:[#allocation5 + $0xb8] sm:$0xf]
    %v161 = vld [vmem:[#allocation5 + $0xbc] sm:$0xf]
    %v162 = vld [vmem:[#allocation5 + $0xc0] sm:$0xf]
    %v163 = vld [vmem:[#allocation5 + $0xc4] sm:$0xf]
    %v164 = vld [vmem:[#allocation5 + $0xc8] sm:$0xf]
    %v165 = vld [vmem:[#allocation5 + $0xcc] sm:$0xf]
    %v166 = vld [vmem:[#allocation5 + $0xd0] sm:$0xf]
    %v167 = vld [vmem:[#allocation5 + $0xd4] sm:$0xf]
    %v168 = vld [vmem:[#allocation5 + $0xd8] sm:$0xf]
    %v169 = vld [vmem:[#allocation5 + $0xdc] sm:$0xf]
    %v170 = vld [vmem:[#allocation5 + $0xe0] sm:$0xf]
    %v171 = vld [vmem:[#allocation5 + $0xe4] sm:$0xf]
    %v172 = vld [vmem:[#allocation5 + $0xe8] sm:$0xf]
    %v173 = vld [vmem:[#allocation5 + $0xec] sm:$0xf]
    %v174 = vld [vmem:[#allocation5 + $0xf0] sm:$0xf]
    %v175 = vld [vmem:[#allocation5 + $0xf4] sm:$0xf]
    %v176 = vld [vmem:[#allocation5 + $0xf8] sm:$0xf]
    %v177 = vld [vmem:[#allocation5 + $0xfc] sm:$0xf]
    %v178 = vld [vmem:[#allocation5 + $0x100] sm:$0xf]
    %v179 = vld [vmem:[#allocation5 + $0x104] sm:$0xf]
    %v180 = vld [vmem:[#allocation5 + $0x108] sm:$0xf]
    %v181 = vld [vmem:[#allocation5 + $0x10c] sm:$0xf]
    %v182 = vld [vmem:[#allocation5 + $0x110] sm:$0xf]
    %v183 = vld [vmem:[#allocation5 + $0x114] sm:$0xf]
    %v184 = vld [vmem:[#allocation5 + $0x118] sm:$0xf]
    %v185 = vld [vmem:[#allocation5 + $0x11c] sm:$0xf]
    %v186 = vld [vmem:[#allocation5 + $0x120] sm:$0xf]
    %v187 = vld [vmem:[#allocation5 + $0x124] sm:$0xf]
    %v188 = vld [vmem:[#allocation5 + $0x128] sm:$0xf]
    %v189 = vld [vmem:[#allocation5 + $0x12c] sm:$0xf]
    %v190 = vld [vmem:[#allocation5 + $0x130] sm:$0xf]
    %v191 = vld [vmem:[#allocation5 + $0x134] sm:$0xf]
    %v192 = vld [vmem:[#allocation5 + $0x138] sm:$0xf]
    %v193 = vld [vmem:[#allocation5 + $0x13c] sm:$0xf]
    %v194 = vld [vmem:[#allocation5 + $0x140] sm:$0xf]
    %v195 = vld [vmem:[#allocation5 + $0x144] sm:$0xf]
    %v196 = vld [vmem:[#allocation5 + $0x148] sm:$0xf]
    %v197 = vld [vmem:[#allocation5 + $0x14c] sm:$0xf]
    %v198 = vld [vmem:[#allocation5 + $0x150] sm:$0xf]
    %v199 = vld [vmem:[#allocation5 + $0x154] sm:$0xf]
    %v200 = vld [vmem:[#allocation5 + $0x158] sm:$0xf]
    %v201 = vld [vmem:[#allocation5 + $0x15c] sm:$0xf]
    %v202 = vld [vmem:[#allocation5 + $0x160] sm:$0xf]
    %v203 = vld [vmem:[#allocation5 + $0x164] sm:$0xf]
    %v204 = vld [vmem:[#allocation5 + $0x168] sm:$0xf]
    %v205 = vld [vmem:[#allocation5 + $0x16c] sm:$0xf]
    %v206 = vld [vmem:[#allocation5 + $0x170] sm:$0xf]
    %v207 = vld [vmem:[#allocation5 + $0x174] sm:$0xf]
    %v208 = vld [vmem:[#allocation5 + $0x178] sm:$0xf]
    %v209 = vld [vmem:[#allocation5 + $0x17c] sm:$0xf]
    %v210 = vld [vmem:[#allocation5 + $0x180] sm:$0xf]
    %v211 = vld [vmem:[#allocation5 + $0x184] sm:$0xf]
    %v212 = vld [vmem:[#allocation5 + $0x188] sm:$0xf]
    %v213 = vld [vmem:[#allocation5 + $0x18c] sm:$0xf]
    %v214 = vld [vmem:[#allocation5 + $0x190] sm:$0xf]
    %v215 = vld [vmem:[#allocation5 + $0x194] sm:$0xf]
    %v216 = vld [vmem:[#allocation5 + $0x198] sm:$0xf]
    %v217 = vld [vmem:[#allocation5 + $0x19c] sm:$0xf]
    %v218 = vld [vmem:[#allocation5 + $0x1a0] sm:$0xf]
    %v219 = vld [vmem:[#allocation5 + $0x1a4] sm:$0xf]
    %v220 = vld [vmem:[#allocation5 + $0x1a8] sm:$0xf]
    %v221 = vld [vmem:[#allocation5 + $0x1ac] sm:$0xf]
    %v222 = vld [vmem:[#allocation5 + $0x1b0] sm:$0xf]
    %v223 = vld [vmem:[#allocation5 + $0x1b4] sm:$0xf]
    %v224 = vld [vmem:[#allocation5 + $0x1b8] sm:$0xf]
    %v225 = vld [vmem:[#allocation5 + $0x1bc] sm:$0xf]
    %v226 = vld [vmem:[#allocation5 + $0x1c0] sm:$0xf]
    %v227 = vld [vmem:[#allocation5 + $0x1c4] sm:$0xf]
    %v228 = vld [vmem:[#allocation5 + $0x1c8] sm:$0xf]
    %v229 = vld [vmem:[#allocation5 + $0x1cc] sm:$0xf]
    %v230 = vld [vmem:[#allocation5 + $0x1d0] sm:$0xf]
    %v231 = vld [vmem:[#allocation5 + $0x1d4] sm:$0xf]
    %v232 = vld [vmem:[#allocation5 + $0x1d8] sm:$0xf]
    %v233 = vld [vmem:[#allocation5 + $0x1dc] sm:$0xf]
    %v234 = vld [vmem:[#allocation5 + $0x1e0] sm:$0xf]
    %v235 = vld [vmem:[#allocation5 + $0x1e4] sm:$0xf]
    %v236 = vld [vmem:[#allocation5 + $0x1e8] sm:$0xf]
    %v237 = vld [vmem:[#allocation5 + $0x1ec] sm:$0xf]
    %v238 = vld [vmem:[#allocation5 + $0x1f0] sm:$0xf]
    %v239 = vld [vmem:[#allocation5 + $0x1f4] sm:$0xf]
    %v240 = vld [vmem:[#allocation5 + $0x1f8] sm:$0xf]
    %v241 = vld [vmem:[#allocation5 + $0x1fc] sm:$0xf]
    %v242 = vld [vmem:[%s4] sm:$0x1]
    %v244 = vlaneseq
    %v245 = vshrl.u32 %v244, 7
    %v246 = vsub.s32 0, %v245
    %v247 = vrot.slane %v242, %v246
    %v377 = vunpack.c.l.b16 %v114
    %v378 = vunpack.c.l.b16 %v115
    %v379 = vunpack.c.l.b16 %v116
    %v380 = vunpack.c.l.b16 %v117
    %v381 = vunpack.c.l.b16 %v118
    %v382 = vunpack.c.l.b16 %v119
    %v383 = vunpack.c.l.b16 %v120
    %v384 = vunpack.c.l.b16 %v121
    %v385 = vunpack.c.l.b16 %v122
    %v386 = vunpack.c.l.b16 %v123
    %v387 = vunpack.c.l.b16 %v124
    %v388 = vunpack.c.l.b16 %v125
    %v389 = vunpack.c.l.b16 %v126
    %v390 = vunpack.c.l.b16 %v127
    %v391 = vunpack.c.l.b16 %v128
    %v392 = vunpack.c.l.b16 %v129
    %v393 = vunpack.c.l.b16 %v130
    %v394 = vunpack.c.l.b16 %v131
    %v395 = vunpack.c.l.b16 %v132
    %v396 = vunpack.c.l.b16 %v133
    %v397 = vunpack.c.l.b16 %v134
    %v398 = vunpack.c.l.b16 %v135
    %v399 = vunpack.c.l.b16 %v136
    %v400 = vunpack.c.l.b16 %v137
    %v401 = vunpack.c.l.b16 %v138
    %v402 = vunpack.c.l.b16 %v139
    %v403 = vunpack.c.l.b16 %v140
    %v404 = vunpack.c.l.b16 %v141
    %v405 = vunpack.c.l.b16 %v142
    %v406 = vunpack.c.l.b16 %v143
    %v407 = vunpack.c.l.b16 %v144
    %v408 = vunpack.c.l.b16 %v145
    %v409 = vunpack.c.l.b16 %v146
    %v410 = vunpack.c.l.b16 %v147
    %v411 = vunpack.c.l.b16 %v148
    %v412 = vunpack.c.l.b16 %v149
    %v413 = vunpack.c.l.b16 %v150
    %v414 = vunpack.c.l.b16 %v151
    %v415 = vunpack.c.l.b16 %v152
    %v416 = vunpack.c.l.b16 %v153
    %v417 = vunpack.c.l.b16 %v154
    %v418 = vunpack.c.l.b16 %v155
    %v419 = vunpack.c.l.b16 %v156
    %v420 = vunpack.c.l.b16 %v157
    %v421 = vunpack.c.l.b16 %v158
    %v422 = vunpack.c.l.b16 %v159
    %v423 = vunpack.c.l.b16 %v160
    %v424 = vunpack.c.l.b16 %v161
    %v425 = vunpack.c.l.b16 %v162
    %v426 = vunpack.c.l.b16 %v163
    %v427 = vunpack.c.l.b16 %v164
    %v428 = vunpack.c.l.b16 %v165
    %v429 = vunpack.c.l.b16 %v166
    %v430 = vunpack.c.l.b16 %v167
    %v431 = vunpack.c.l.b16 %v168
    %v432 = vunpack.c.l.b16 %v169
    %v433 = vunpack.c.l.b16 %v170
    %v434 = vunpack.c.l.b16 %v171
    %v435 = vunpack.c.l.b16 %v172
    %v436 = vunpack.c.l.b16 %v173
    %v437 = vunpack.c.l.b16 %v174
    %v438 = vunpack.c.l.b16 %v175
    %v439 = vunpack.c.l.b16 %v176
    %v440 = vunpack.c.l.b16 %v177
    %v441 = vunpack.c.l.b16 %v178
    %v442 = vunpack.c.l.b16 %v179
    %v443 = vunpack.c.l.b16 %v180
    %v444 = vunpack.c.l.b16 %v181
    %v445 = vunpack.c.l.b16 %v182
    %v446 = vunpack.c.l.b16 %v183
    %v447 = vunpack.c.l.b16 %v184
    %v448 = vunpack.c.l.b16 %v185
    %v449 = vunpack.c.l.b16 %v186
    %v450 = vunpack.c.l.b16 %v187
    %v451 = vunpack.c.l.b16 %v188
    %v452 = vunpack.c.l.b16 %v189
    %v453 = vunpack.c.l.b16 %v190
    %v454 = vunpack.c.l.b16 %v191
    %v455 = vunpack.c.l.b16 %v192
    %v456 = vunpack.c.l.b16 %v193
    %v457 = vunpack.c.l.b16 %v194
    %v458 = vunpack.c.l.b16 %v195
    %v459 = vunpack.c.l.b16 %v196
    %v460 = vunpack.c.l.b16 %v197
    %v461 = vunpack.c.l.b16 %v198
    %v462 = vunpack.c.l.b16 %v199
    %v463 = vunpack.c.l.b16 %v200
    %v464 = vunpack.c.l.b16 %v201
    %v465 = vunpack.c.l.b16 %v202
    %v466 = vunpack.c.l.b16 %v203
    %v467 = vunpack.c.l.b16 %v204
    %v468 = vunpack.c.l.b16 %v205
    %v469 = vunpack.c.l.b16 %v206
    %v470 = vunpack.c.l.b16 %v207
    %v471 = vunpack.c.l.b16 %v208
    %v472 = vunpack.c.l.b16 %v209
    %v473 = vunpack.c.l.b16 %v210
    %v474 = vunpack.c.l.b16 %v211
    %v475 = vunpack.c.l.b16 %v212
    %v476 = vunpack.c.l.b16 %v213
    %v477 = vunpack.c.l.b16 %v214
    %v478 = vunpack.c.l.b16 %v215
    %v479 = vunpack.c.l.b16 %v216
    %v480 = vunpack.c.l.b16 %v217
    %v481 = vunpack.c.l.b16 %v218
    %v482 = vunpack.c.l.b16 %v219
    %v483 = vunpack.c.l.b16 %v220
    %v484 = vunpack.c.l.b16 %v221
    %v485 = vunpack.c.l.b16 %v222
    %v486 = vunpack.c.l.b16 %v223
    %v487 = vunpack.c.l.b16 %v224
    %v488 = vunpack.c.l.b16 %v225
    %v489 = vunpack.c.l.b16 %v226
    %v490 = vunpack.c.l.b16 %v227
    %v491 = vunpack.c.l.b16 %v228
    %v492 = vunpack.c.l.b16 %v229
    %v493 = vunpack.c.l.b16 %v230
    %v494 = vunpack.c.l.b16 %v231
    %v495 = vunpack.c.l.b16 %v232
    %v496 = vunpack.c.l.b16 %v233
    %v497 = vunpack.c.l.b16 %v234
    %v498 = vunpack.c.l.b16 %v235
    %v499 = vunpack.c.l.b16 %v236
    %v500 = vunpack.c.l.b16 %v237
    %v501 = vunpack.c.l.b16 %v238
    %v502 = vunpack.c.l.b16 %v239
    %v503 = vunpack.c.l.b16 %v240
    %v504 = vunpack.c.l.b16 %v241
    %v505 = vpack.c.b16 %v378, %v377
    %v506 = vpack.c.b16 %v380, %v379
    %v507 = vpack.c.b16 %v382, %v381
    %v508 = vpack.c.b16 %v384, %v383
    %v509 = vpack.c.b16 %v386, %v385
    %v510 = vpack.c.b16 %v388, %v387
    %v511 = vpack.c.b16 %v390, %v389
    %v512 = vpack.c.b16 %v392, %v391
    %v513 = vpack.c.b16 %v394, %v393
    %v514 = vpack.c.b16 %v396, %v395
    %v515 = vpack.c.b16 %v398, %v397
    %v516 = vpack.c.b16 %v400, %v399
    %v517 = vpack.c.b16 %v402, %v401
    %v518 = vpack.c.b16 %v404, %v403
    %v519 = vpack.c.b16 %v406, %v405
    %v520 = vpack.c.b16 %v408, %v407
    %v521 = vpack.c.b16 %v410, %v409
    %v522 = vpack.c.b16 %v412, %v411
    %v523 = vpack.c.b16 %v414, %v413
    %v524 = vpack.c.b16 %v416, %v415
    %v525 = vpack.c.b16 %v418, %v417
    %v526 = vpack.c.b16 %v420, %v419
    %v527 = vpack.c.b16 %v422, %v421
    %v528 = vpack.c.b16 %v424, %v423
    %v529 = vpack.c.b16 %v426, %v425
    %v530 = vpack.c.b16 %v428, %v427
    %v531 = vpack.c.b16 %v430, %v429
    %v532 = vpack.c.b16 %v432, %v431
    %v533 = vpack.c.b16 %v434, %v433
    %v534 = vpack.c.b16 %v436, %v435
    %v535 = vpack.c.b16 %v438, %v437
    %v536 = vpack.c.b16 %v440, %v439
    %v537 = vpack.c.b16 %v442, %v441
    %v538 = vpack.c.b16 %v444, %v443
    %v539 = vpack.c.b16 %v446, %v445
    %v540 = vpack.c.b16 %v448, %v447
    %v541 = vpack.c.b16 %v450, %v449
    %v542 = vpack.c.b16 %v452, %v451
    %v543 = vpack.c.b16 %v454, %v453
    %v544 = vpack.c.b16 %v456, %v455
    %v545 = vpack.c.b16 %v458, %v457
    %v546 = vpack.c.b16 %v460, %v459
    %v547 = vpack.c.b16 %v462, %v461
    %v548 = vpack.c.b16 %v464, %v463
    %v549 = vpack.c.b16 %v466, %v465
    %v550 = vpack.c.b16 %v468, %v467
    %v551 = vpack.c.b16 %v470, %v469
    %v552 = vpack.c.b16 %v472, %v471
    %v553 = vpack.c.b16 %v474, %v473
    %v554 = vpack.c.b16 %v476, %v475
    %v555 = vpack.c.b16 %v478, %v477
    %v556 = vpack.c.b16 %v480, %v479
    %v557 = vpack.c.b16 %v482, %v481
    %v558 = vpack.c.b16 %v484, %v483
    %v559 = vpack.c.b16 %v486, %v485
    %v560 = vpack.c.b16 %v488, %v487
    %v561 = vpack.c.b16 %v490, %v489
    %v562 = vpack.c.b16 %v492, %v491
    %v563 = vpack.c.b16 %v494, %v493
    %v564 = vpack.c.b16 %v496, %v495
    %v565 = vpack.c.b16 %v498, %v497
    %v566 = vpack.c.b16 %v500, %v499
    %v567 = vpack.c.b16 %v502, %v501
    %v568 = vpack.c.b16 %v504, %v503
    %633 = vmatprep.subr.bf16.mxu0 0
    %634 = vmatpush1.bf16.msra.mxu0 %v505
    %635 = vmatprep.subr.bf16.mxu0 0
    %636 = vmatpush1.bf16.msra.mxu0 %v506
    %637 = vmatprep.subr.bf16.mxu0 0
    %638 = vmatpush1.bf16.msra.mxu0 %v507
    %639 = vmatprep.subr.bf16.mxu0 0
    %640 = vmatpush1.bf16.msra.mxu0 %v508
    %641 = vmatprep.subr.bf16.mxu0 0
    %642 = vmatpush1.bf16.msra.mxu0 %v509
    %643 = vmatprep.subr.bf16.mxu0 0
    %644 = vmatpush1.bf16.msra.mxu0 %v510
    %645 = vmatprep.subr.bf16.mxu0 0
    %646 = vmatpush1.bf16.msra.mxu0 %v511
    %647 = vmatprep.subr.bf16.mxu0 0
    %648 = vmatpush1.bf16.msra.mxu0 %v512
    %649 = vmatprep.subr.bf16.mxu0 0
    %650 = vmatpush1.bf16.msra.mxu0 %v513
    %651 = vmatprep.subr.bf16.mxu0 0
    %652 = vmatpush1.bf16.msra.mxu0 %v514
    %653 = vmatprep.subr.bf16.mxu0 0
    %654 = vmatpush1.bf16.msra.mxu0 %v515
    %655 = vmatprep.subr.bf16.mxu0 0
    %656 = vmatpush1.bf16.msra.mxu0 %v516
    %657 = vmatprep.subr.bf16.mxu0 0
    %658 = vmatpush1.bf16.msra.mxu0 %v517
    %659 = vmatprep.subr.bf16.mxu0 0
    %660 = vmatpush1.bf16.msra.mxu0 %v518
    %661 = vmatprep.subr.bf16.mxu0 0
    %662 = vmatpush1.bf16.msra.mxu0 %v519
    %663 = vmatprep.subr.bf16.mxu0 0
    %664 = vmatpush1.bf16.msra.mxu0 %v520
    %665 = vmatprep.mubr.bf16.mxu0 %v106
    %666 = vmatmul.mubr.bf16.gmra.mrb[0].mxu0 %v105
    %v667 = vpop.f32.mrb[0].mxu0
    %v668 = vadd.f32 %v247, %v667
    %v669 = vpop.f32.mrb[0].mxu0
    %v670 = vpop.f32.mrb[0].mxu0
    %v671 = vpop.f32.mrb[0].mxu0
    %672 = vdwg.mxu0
    %673 = vmatprep.subr.bf16.mxu0 0
    %674 = vmatpush1.bf16.msra.mxu0 %v521
    %675 = vmatprep.subr.bf16.mxu0 0
    %676 = vmatpush1.bf16.msra.mxu0 %v522
    %677 = vmatprep.subr.bf16.mxu0 0
    %678 = vmatpush1.bf16.msra.mxu0 %v523
    %679 = vmatprep.subr.bf16.mxu0 0
    %680 = vmatpush1.bf16.msra.mxu0 %v524
    %681 = vmatprep.subr.bf16.mxu0 0
    %682 = vmatpush1.bf16.msra.mxu0 %v525
    %683 = vmatprep.subr.bf16.mxu0 0
    %684 = vmatpush1.bf16.msra.mxu0 %v526
    %685 = vmatprep.subr.bf16.mxu0 0
    %686 = vmatpush1.bf16.msra.mxu0 %v527
    %687 = vmatprep.subr.bf16.mxu0 0
    %688 = vmatpush1.bf16.msra.mxu0 %v528
    %689 = vmatprep.subr.bf16.mxu0 0
    %690 = vmatpush1.bf16.msra.mxu0 %v529
    %691 = vmatprep.subr.bf16.mxu0 0
    %692 = vmatpush1.bf16.msra.mxu0 %v530
    %693 = vmatprep.subr.bf16.mxu0 0
    %694 = vmatpush1.bf16.msra.mxu0 %v531
    %695 = vmatprep.subr.bf16.mxu0 0
    %696 = vmatpush1.bf16.msra.mxu0 %v532
    %697 = vmatprep.subr.bf16.mxu0 0
    %698 = vmatpush1.bf16.msra.mxu0 %v533
    %699 = vmatprep.subr.bf16.mxu0 0
    %700 = vmatpush1.bf16.msra.mxu0 %v534
    %701 = vmatprep.subr.bf16.mxu0 0
    %702 = vmatpush1.bf16.msra.mxu0 %v535
    %703 = vmatprep.subr.bf16.mxu0 0
    %704 = vmatpush1.bf16.msra.mxu0 %v536
    %705 = vmatprep.mubr.bf16.mxu0 %v108
    %706 = vmatmul.mubr.bf16.gmra.mrb[0].mxu0 %v107
    %v707 = vpop.f32.mrb[0].mxu0
    %v708 = vadd.f32 %v668, %v707
    %v709 = vpop.f32.mrb[0].mxu0
    %v710 = vpop.f32.mrb[0].mxu0
    %v711 = vpop.f32.mrb[0].mxu0
    %712 = vdwg.mxu0
    %713 = vmatprep.subr.bf16.mxu0 0
    %714 = vmatpush1.bf16.msra.mxu0 %v537
    %715 = vmatprep.subr.bf16.mxu0 0
    %716 = vmatpush1.bf16.msra.mxu0 %v538
    %717 = vmatprep.subr.bf16.mxu0 0
    %718 = vmatpush1.bf16.msra.mxu0 %v539
    %719 = vmatprep.subr.bf16.mxu0 0
    %720 = vmatpush1.bf16.msra.mxu0 %v540
    %721 = vmatprep.subr.bf16.mxu0 0
    %722 = vmatpush1.bf16.msra.mxu0 %v541
    %723 = vmatprep.subr.bf16.mxu0 0
    %724 = vmatpush1.bf16.msra.mxu0 %v542
    %725 = vmatprep.subr.bf16.mxu0 0
    %726 = vmatpush1.bf16.msra.mxu0 %v543
    %727 = vmatprep.subr.bf16.mxu0 0
    %728 = vmatpush1.bf16.msra.mxu0 %v544
    %729 = vmatprep.subr.bf16.mxu0 0
    %730 = vmatpush1.bf16.msra.mxu0 %v545
    %731 = vmatprep.subr.bf16.mxu0 0
    %732 = vmatpush1.bf16.msra.mxu0 %v546
    %733 = vmatprep.subr.bf16.mxu0 0
    %734 = vmatpush1.bf16.msra.mxu0 %v547
    %735 = vmatprep.subr.bf16.mxu0 0
    %736 = vmatpush1.bf16.msra.mxu0 %v548
    %737 = vmatprep.subr.bf16.mxu0 0
    %738 = vmatpush1.bf16.msra.mxu0 %v549
    %739 = vmatprep.subr.bf16.mxu0 0
    %740 = vmatpush1.bf16.msra.mxu0 %v550
    %741 = vmatprep.subr.bf16.mxu0 0
    %742 = vmatpush1.bf16.msra.mxu0 %v551
    %743 = vmatprep.subr.bf16.mxu0 0
    %744 = vmatpush1.bf16.msra.mxu0 %v552
    %745 = vmatprep.mubr.bf16.mxu0 %v110
    %746 = vmatmul.mubr.bf16.gmra.mrb[0].mxu0 %v109
    %v747 = vpop.f32.mrb[0].mxu0
    %v748 = vadd.f32 %v708, %v747
    %v749 = vpop.f32.mrb[0].mxu0
    %v750 = vpop.f32.mrb[0].mxu0
    %v751 = vpop.f32.mrb[0].mxu0
    %752 = vdwg.mxu0
    %753 = vmatprep.subr.bf16.mxu0 0
    %754 = vmatpush1.bf16.msra.mxu0 %v553
    %755 = vmatprep.subr.bf16.mxu0 0
    %756 = vmatpush1.bf16.msra.mxu0 %v554
    %757 = vmatprep.subr.bf16.mxu0 0
    %758 = vmatpush1.bf16.msra.mxu0 %v555
    %759 = vmatprep.subr.bf16.mxu0 0
    %760 = vmatpush1.bf16.msra.mxu0 %v556
    %761 = vmatprep.subr.bf16.mxu0 0
    %762 = vmatpush1.bf16.msra.mxu0 %v557
    %763 = vmatprep.subr.bf16.mxu0 0
    %764 = vmatpush1.bf16.msra.mxu0 %v558
    %765 = vmatprep.subr.bf16.mxu0 0
    %766 = vmatpush1.bf16.msra.mxu0 %v559
    %767 = vmatprep.subr.bf16.mxu0 0
    %768 = vmatpush1.bf16.msra.mxu0 %v560
    %769 = vmatprep.subr.bf16.mxu0 0
    %770 = vmatpush1.bf16.msra.mxu0 %v561
    %771 = vmatprep.subr.bf16.mxu0 0
    %772 = vmatpush1.bf16.msra.mxu0 %v562
    %773 = vmatprep.subr.bf16.mxu0 0
    %774 = vmatpush1.bf16.msra.mxu0 %v563
    %775 = vmatprep.subr.bf16.mxu0 0
    %776 = vmatpush1.bf16.msra.mxu0 %v564
    %777 = vmatprep.subr.bf16.mxu0 0
    %778 = vmatpush1.bf16.msra.mxu0 %v565
    %779 = vmatprep.subr.bf16.mxu0 0
    %780 = vmatpush1.bf16.msra.mxu0 %v566
    %781 = vmatprep.subr.bf16.mxu0 0
    %782 = vmatpush1.bf16.msra.mxu0 %v567
    %783 = vmatprep.subr.bf16.mxu0 0
    %784 = vmatpush1.bf16.msra.mxu0 %v568
    %785 = vmatprep.mubr.bf16.mxu0 %v112
    %786 = vmatmul.mubr.bf16.gmra.mrb[0].mxu0 %v111
    %v787 = vpop.f32.mrb[0].mxu0
    %v788 = vadd.f32 %v748, %v787
    %v789 = vpop.f32.mrb[0].mxu0
    %v790 = vpop.f32.mrb[0].mxu0
    %v791 = vpop.f32.mrb[0].mxu0
    %792 = vdwg.mxu0
    %v793 = vmax.f32 %v788, 0.0
    %v794 = vpack.c.bf16 %v793, %v793
    %v795 = vld [vmem:[#allocation8] sm:$0xf]
    %v796 = vld [vmem:[#allocation8 + $0x4] sm:$0xf]
    %v797 = vld [vmem:[#allocation8 + $0x8] sm:$0xf]
    %v798 = vld [vmem:[#allocation8 + $0xc] sm:$0xf]
    %v799 = vld [vmem:[#allocation8 + $0x10] sm:$0xf]
    %v800 = vld [vmem:[#allocation8 + $0x14] sm:$0xf]
    %v801 = vld [vmem:[#allocation8 + $0x18] sm:$0xf]
    %v802 = vld [vmem:[#allocation8 + $0x1c] sm:$0xf]
    %v803 = vld [vmem:[#allocation8 + $0x20] sm:$0xf]
    %v804 = vld [vmem:[#allocation8 + $0x24] sm:$0xf]
    %v805 = vld [vmem:[#allocation8 + $0x28] sm:$0xf]
    %v806 = vld [vmem:[#allocation8 + $0x2c] sm:$0xf]
    %v807 = vld [vmem:[#allocation8 + $0x30] sm:$0xf]
    %v808 = vld [vmem:[#allocation8 + $0x34] sm:$0xf]
    %v809 = vld [vmem:[#allocation8 + $0x38] sm:$0xf]
    %v810 = vld [vmem:[#allocation8 + $0x3c] sm:$0xf]
    %v811 = vld [vmem:[%s7] sm:$0x1]
    %v813 = vlaneseq
    %v814 = vshrl.u32 %v813, 7
    %v815 = vsub.s32 0, %v814
    %v816 = vrot.slane %v811, %v815
    %v834 = vunpack.c.l.b16 %v795
    %v835 = vunpack.c.l.b16 %v796
    %v836 = vunpack.c.l.b16 %v797
    %v837 = vunpack.c.l.b16 %v798
    %v838 = vunpack.c.l.b16 %v799
    %v839 = vunpack.c.l.b16 %v800
    %v840 = vunpack.c.l.b16 %v801
    %v841 = vunpack.c.l.b16 %v802
    %v842 = vunpack.c.l.b16 %v803
    %v843 = vunpack.c.l.b16 %v804
    %v844 = vunpack.c.l.b16 %v805
    %v845 = vunpack.c.l.b16 %v806
    %v846 = vunpack.c.l.b16 %v807
    %v847 = vunpack.c.l.b16 %v808
    %v848 = vunpack.c.l.b16 %v809
    %v849 = vunpack.c.l.b16 %v810
    %v850 = vpack.c.b16 %v835, %v834
    %v851 = vpack.c.b16 %v837, %v836
    %v852 = vpack.c.b16 %v839, %v838
    %v853 = vpack.c.b16 %v841, %v840
    %v854 = vpack.c.b16 %v843, %v842
    %v855 = vpack.c.b16 %v845, %v844
    %v856 = vpack.c.b16 %v847, %v846
    %v857 = vpack.c.b16 %v849, %v848
    %866 = vmatprep.subr.bf16.mxu0 0
    %867 = vmatpush1.bf16.msra.mxu0 %v850
    %868 = vmatprep.subr.bf16.mxu0 0
    %869 = vmatpush1.bf16.msra.mxu0 %v851
    %870 = vmatprep.subr.bf16.mxu0 0
    %871 = vmatpush1.bf16.msra.mxu0 %v852
    %872 = vmatprep.subr.bf16.mxu0 0
    %873 = vmatpush1.bf16.msra.mxu0 %v853
    %874 = vmatprep.subr.bf16.mxu0 0
    %875 = vmatpush1.bf16.msra.mxu0 %v854
    %876 = vmatprep.subr.bf16.mxu0 0
    %877 = vmatpush1.bf16.msra.mxu0 %v855
    %878 = vmatprep.subr.bf16.mxu0 0
    %879 = vmatpush1.bf16.msra.mxu0 %v856
    %880 = vmatprep.subr.bf16.mxu0 0
    %881 = vmatpush1.bf16.msra.mxu0 %v857
    %882 = vmatprep.subr.bf16.mxu0 0
    %883 = vmatpush1.bf16.msra.mxu0 0
    %884 = vmatprep.subr.bf16.mxu0 0
    %885 = vmatpush1.bf16.msra.mxu0 0
    %886 = vmatprep.subr.bf16.mxu0 0
    %887 = vmatpush1.bf16.msra.mxu0 0
    %888 = vmatprep.subr.bf16.mxu0 0
    %889 = vmatpush1.bf16.msra.mxu0 0
    %890 = vmatprep.subr.bf16.mxu0 0
    %891 = vmatpush1.bf16.msra.mxu0 0
    %892 = vmatprep.subr.bf16.mxu0 0
    %893 = vmatpush1.bf16.msra.mxu0 0
    %894 = vmatprep.subr.bf16.mxu0 0
    %895 = vmatpush1.bf16.msra.mxu0 0
    %896 = vmatprep.subr.bf16.mxu0 0
    %897 = vmatpush1.bf16.msra.mxu0 0
    %898 = vmatprep.mubr.bf16.mxu0 0
    %899 = vmatmul.mubr.bf16.gmra.mrb[0].mxu0 %v794
    %v900 = vpop.f32.mrb[0].mxu0
    %v901 = vadd.f32 %v816, %v900
    %v902 = vpop.f32.mrb[0].mxu0
    %v903 = vpop.f32.mrb[0].mxu0
    %v904 = vpop.f32.mrb[0].mxu0
    %905 = vdwg.mxu0
    %v906 = vlaneseq
    %v907 = vand.u32 %v906, 127
    %vm908 = vcmp.lt.s32.totalorder %v907, 10
    %v909 = vsel %vm908, %v901, -1e+30
    %910 = vmax.xlane.f32.xlu0 %v909
    %v911 = vpop.xlane.xlu0 %910
    %v912 = vsub.f32 %v909, %v911
    %v913 = vmul.f32 %v912, 1.442695
    %v914 = vpow.pop %v913
    %915 = vadd.xlane.f32.xlu0 %v914
    %v916 = vpop.xlane.xlu0 %915
    %v917 = vrcp.pop %v916
    %v918 = vmul.f32 %v914, %v917
    %919 = vset.pattern.permute.xlu0 0
    %920 = vperm.xlu0 %919, %v113
    %v921 = vpop.permute.xlu0 %920
    %vm922 = vcmp.eq.s32.totalorder %v907, %v921
    %v923 = vsel %vm922, 1, 0
    %v924 = vcvt.s32.f32 %v923
    %v925 = vsub.f32 %v918, %v924
    %v926 = vmul.f32 %v925, 0.5
    %v927 = vpack.c.bf16 %v926, %v926
    %v928 = vld [vmem:[#allocation10] sm:$0xf]
    %v929 = vld [vmem:[#allocation10 + $0x4] sm:$0xf]
    %v930 = vld [vmem:[#allocation10 + $0x8] sm:$0xf]
    %v931 = vld [vmem:[#allocation10 + $0xc] sm:$0xf]
    %v932 = vld [vmem:[#allocation10 + $0x10] sm:$0xf]
    %v933 = vld [vmem:[#allocation10 + $0x14] sm:$0xf]
    %v934 = vld [vmem:[#allocation10 + $0x18] sm:$0xf]
    %v935 = vld [vmem:[#allocation10 + $0x1c] sm:$0xf]
    %v936 = vld [vmem:[#allocation10 + $0x20] sm:$0xf]
    %v937 = vld [vmem:[#allocation10 + $0x24] sm:$0xf]
    %v938 = vld [vmem:[#allocation10 + $0x28] sm:$0xf]
    %v939 = vld [vmem:[#allocation10 + $0x2c] sm:$0xf]
    %v940 = vld [vmem:[#allocation10 + $0x30] sm:$0xf]
    %v941 = vld [vmem:[#allocation10 + $0x34] sm:$0xf]
    %v942 = vld [vmem:[#allocation10 + $0x38] sm:$0xf]
    %v943 = vld [vmem:[#allocation10 + $0x3c] sm:$0xf]
    %v960 = vunpack.c.l.b16 %v928
    %v961 = vunpack.c.l.b16 %v929
    %v962 = vunpack.c.l.b16 %v930
    %v963 = vunpack.c.l.b16 %v931
    %v964 = vunpack.c.l.b16 %v932
    %v965 = vunpack.c.l.b16 %v933
    %v966 = vunpack.c.l.b16 %v934
    %v967 = vunpack.c.l.b16 %v935
    %v968 = vunpack.c.l.b16 %v936
    %v969 = vunpack.c.l.b16 %v937
    %v970 = vunpack.c.l.b16 %v938
    %v971 = vunpack.c.l.b16 %v939
    %v972 = vunpack.c.l.b16 %v940
    %v973 = vunpack.c.l.b16 %v941
    %v974 = vunpack.c.l.b16 %v942
    %v975 = vunpack.c.l.b16 %v943
    %v976 = vpack.c.b16 %v961, %v960
    %v977 = vpack.c.b16 %v963, %v962
    %v978 = vpack.c.b16 %v965, %v964
    %v979 = vpack.c.b16 %v967, %v966
    %v980 = vpack.c.b16 %v969, %v968
    %v981 = vpack.c.b16 %v971, %v970
    %v982 = vpack.c.b16 %v973, %v972
    %v983 = vpack.c.b16 %v975, %v974
    %992 = vmatprep.subr.bf16.mxu0 0
    %993 = vmatpush1.bf16.msra.mxu0 %v976
    %994 = vmatprep.subr.bf16.mxu0 0
    %995 = vmatpush1.bf16.msra.mxu0 %v977
    %996 = vmatprep.subr.bf16.mxu0 0
    %997 = vmatpush1.bf16.msra.mxu0 %v978
    %998 = vmatprep.subr.bf16.mxu0 0
    %999 = vmatpush1.bf16.msra.mxu0 %v979
    %1000 = vmatprep.subr.bf16.mxu0 0
    %1001 = vmatpush1.bf16.msra.mxu0 %v980
    %1002 = vmatprep.subr.bf16.mxu0 0
    %1003 = vmatpush1.bf16.msra.mxu0 %v981
    %1004 = vmatprep.subr.bf16.mxu0 0
    %1005 = vmatpush1.bf16.msra.mxu0 %v982
    %1006 = vmatprep.subr.bf16.mxu0 0
    %1007 = vmatpush1.bf16.msra.mxu0 %v983
    %1008 = vmatprep.subr.bf16.mxu0 0
    %1009 = vmatpush1.bf16.msra.mxu0 0
    %1010 = vmatprep.subr.bf16.mxu0 0
    %1011 = vmatpush1.bf16.msra.mxu0 0
    %1012 = vmatprep.subr.bf16.mxu0 0
    %1013 = vmatpush1.bf16.msra.mxu0 0
    %1014 = vmatprep.subr.bf16.mxu0 0
    %1015 = vmatpush1.bf16.msra.mxu0 0
    %1016 = vmatprep.subr.bf16.mxu0 0
    %1017 = vmatpush1.bf16.msra.mxu0 0
    %1018 = vmatprep.subr.bf16.mxu0 0
    %1019 = vmatpush1.bf16.msra.mxu0 0
    %1020 = vmatprep.subr.bf16.mxu0 0
    %1021 = vmatpush1.bf16.msra.mxu0 0
    %1022 = vmatprep.subr.bf16.mxu0 0
    %1023 = vmatpush1.bf16.msra.mxu0 0
    %1024 = vmatprep.mubr.bf16.mxu0 0
    %1025 = vmatmul.mubr.bf16.gmra.mrb[0].mxu0 %v927
    %v1026 = vpop.f32.mrb[0].mxu0
    %v1027 = vadd.f32 0.0, %v1026
    %v1028 = vpop.f32.mrb[0].mxu0
    %v1029 = vpop.f32.mrb[0].mxu0
    %v1030 = vpop.f32.mrb[0].mxu0
    %1031 = vdwg.mxu0
    %vm1032 = vcmp.gt.f32.partialorder %v788, 0.0
    %v1033 = vmax.f32 %v1027, 0.0
    %v1034 = vsel %vm1032, %v1033, 0.0
    %v1035 = vpack.c.bf16 %v1034, %v1034
    %v1036 = vld [vmem:[#allocation7] sm:$0xff]
    %v1037 = vld [vmem:[#allocation7 + $0x8] sm:$0xff]
    %v1038 = vld [vmem:[#allocation7 + $0x10] sm:$0xff]
    %v1039 = vld [vmem:[#allocation7 + $0x18] sm:$0xff]
    %v1040 = vld [vmem:[#allocation7 + $0x20] sm:$0xff]
    %v1041 = vld [vmem:[#allocation7 + $0x28] sm:$0xff]
    %v1042 = vld [vmem:[#allocation7 + $0x30] sm:$0xff]
    %v1043 = vld [vmem:[#allocation7 + $0x38] sm:$0xff]
    %v1044 = vld [vmem:[#allocation7 + $0x40] sm:$0xff]
    %v1045 = vld [vmem:[#allocation7 + $0x48] sm:$0xff]
    %v1046 = vld [vmem:[#allocation7 + $0x50] sm:$0xff]
    %v1047 = vld [vmem:[#allocation7 + $0x58] sm:$0xff]
    %v1048 = vld [vmem:[#allocation7 + $0x60] sm:$0xff]
    %v1049 = vld [vmem:[#allocation7 + $0x68] sm:$0xff]
    %v1050 = vld [vmem:[#allocation7 + $0x70] sm:$0xff]
    %v1051 = vld [vmem:[#allocation7 + $0x78] sm:$0xff]
    %v1052 = vld [vmem:[#allocation7 + $0x80] sm:$0xff]
    %v1053 = vld [vmem:[#allocation7 + $0x88] sm:$0xff]
    %v1054 = vld [vmem:[#allocation7 + $0x90] sm:$0xff]
    %v1055 = vld [vmem:[#allocation7 + $0x98] sm:$0xff]
    %v1056 = vld [vmem:[#allocation7 + $0xa0] sm:$0xff]
    %v1057 = vld [vmem:[#allocation7 + $0xa8] sm:$0xff]
    %v1058 = vld [vmem:[#allocation7 + $0xb0] sm:$0xff]
    %v1059 = vld [vmem:[#allocation7 + $0xb8] sm:$0xff]
    %v1060 = vld [vmem:[#allocation7 + $0xc0] sm:$0xff]
    %v1061 = vld [vmem:[#allocation7 + $0xc8] sm:$0xff]
    %v1062 = vld [vmem:[#allocation7 + $0xd0] sm:$0xff]
    %v1063 = vld [vmem:[#allocation7 + $0xd8] sm:$0xff]
    %v1064 = vld [vmem:[#allocation7 + $0xe0] sm:$0xff]
    %v1065 = vld [vmem:[#allocation7 + $0xe8] sm:$0xff]
    %v1066 = vld [vmem:[#allocation7 + $0xf0] sm:$0xff]
    %v1067 = vld [vmem:[#allocation7 + $0xf8] sm:$0xff]
    %v1068 = vld [vmem:[#allocation7 + $0x100] sm:$0xff]
    %v1069 = vld [vmem:[#allocation7 + $0x108] sm:$0xff]
    %v1070 = vld [vmem:[#allocation7 + $0x110] sm:$0xff]
    %v1071 = vld [vmem:[#allocation7 + $0x118] sm:$0xff]
    %v1072 = vld [vmem:[#allocation7 + $0x120] sm:$0xff]
    %v1073 = vld [vmem:[#allocation7 + $0x128] sm:$0xff]
    %v1074 = vld [vmem:[#allocation7 + $0x130] sm:$0xff]
    %v1075 = vld [vmem:[#allocation7 + $0x138] sm:$0xff]
    %v1076 = vld [vmem:[#allocation7 + $0x140] sm:$0xff]
    %v1077 = vld [vmem:[#allocation7 + $0x148] sm:$0xff]
    %v1078 = vld [vmem:[#allocation7 + $0x150] sm:$0xff]
    %v1079 = vld [vmem:[#allocation7 + $0x158] sm:$0xff]
    %v1080 = vld [vmem:[#allocation7 + $0x160] sm:$0xff]
    %v1081 = vld [vmem:[#allocation7 + $0x168] sm:$0xff]
    %v1082 = vld [vmem:[#allocation7 + $0x170] sm:$0xff]
    %v1083 = vld [vmem:[#allocation7 + $0x178] sm:$0xff]
    %v1084 = vld [vmem:[#allocation7 + $0x180] sm:$0xff]
    %v1085 = vld [vmem:[#allocation7 + $0x188] sm:$0xff]
    %v1086 = vld [vmem:[#allocation7 + $0x190] sm:$0xff]
    %v1087 = vld [vmem:[#allocation7 + $0x198] sm:$0xff]
    %v1088 = vld [vmem:[#allocation7 + $0x1a0] sm:$0xff]
    %v1089 = vld [vmem:[#allocation7 + $0x1a8] sm:$0xff]
    %v1090 = vld [vmem:[#allocation7 + $0x1b0] sm:$0xff]
    %v1091 = vld [vmem:[#allocation7 + $0x1b8] sm:$0xff]
    %v1092 = vld [vmem:[#allocation7 + $0x1c0] sm:$0xff]
    %v1093 = vld [vmem:[#allocation7 + $0x1c8] sm:$0xff]
    %v1094 = vld [vmem:[#allocation7 + $0x1d0] sm:$0xff]
    %v1095 = vld [vmem:[#allocation7 + $0x1d8] sm:$0xff]
    %v1096 = vld [vmem:[#allocation7 + $0x1e0] sm:$0xff]
    %v1097 = vld [vmem:[#allocation7 + $0x1e8] sm:$0xff]
    %v1098 = vld [vmem:[#allocation7 + $0x1f0] sm:$0xff]
    %v1099 = vld [vmem:[#allocation7 + $0x1f8] sm:$0xff]
    %v1164 = vunpack.c.l.b16 %v1036
    %v1165 = vunpack.c.h.b16 %v1036
    %v1166 = vunpack.c.l.b16 %v1037
    %v1167 = vunpack.c.h.b16 %v1037
    %v1168 = vunpack.c.l.b16 %v1038
    %v1169 = vunpack.c.h.b16 %v1038
    %v1170 = vunpack.c.l.b16 %v1039
    %v1171 = vunpack.c.h.b16 %v1039
    %v1172 = vunpack.c.l.b16 %v1040
    %v1173 = vunpack.c.h.b16 %v1040
    %v1174 = vunpack.c.l.b16 %v1041
    %v1175 = vunpack.c.h.b16 %v1041
    %v1176 = vunpack.c.l.b16 %v1042
    %v1177 = vunpack.c.h.b16 %v1042
    %v1178 = vunpack.c.l.b16 %v1043
    %v1179 = vunpack.c.h.b16 %v1043
    %v1180 = vunpack.c.l.b16 %v1044
    %v1181 = vunpack.c.h.b16 %v1044
    %v1182 = vunpack.c.l.b16 %v1045
    %v1183 = vunpack.c.h.b16 %v1045
    %v1184 = vunpack.c.l.b16 %v1046
    %v1185 = vunpack.c.h.b16 %v1046
    %v1186 = vunpack.c.l.b16 %v1047
    %v1187 = vunpack.c.h.b16 %v1047
    %v1188 = vunpack.c.l.b16 %v1048
    %v1189 = vunpack.c.h.b16 %v1048
    %v1190 = vunpack.c.l.b16 %v1049
    %v1191 = vunpack.c.h.b16 %v1049
    %v1192 = vunpack.c.l.b16 %v1050
    %v1193 = vunpack.c.h.b16 %v1050
    %v1194 = vunpack.c.l.b16 %v1051
    %v1195 = vunpack.c.h.b16 %v1051
    %v1196 = vunpack.c.l.b16 %v1052
    %v1197 = vunpack.c.h.b16 %v1052
    %v1198 = vunpack.c.l.b16 %v1053
    %v1199 = vunpack.c.h.b16 %v1053
    %v1200 = vunpack.c.l.b16 %v1054
    %v1201 = vunpack.c.h.b16 %v1054
    %v1202 = vunpack.c.l.b16 %v1055
    %v1203 = vunpack.c.h.b16 %v1055
    %v1204 = vunpack.c.l.b16 %v1056
    %v1205 = vunpack.c.h.b16 %v1056
    %v1206 = vunpack.c.l.b16 %v1057
    %v1207 = vunpack.c.h.b16 %v1057
    %v1208 = vunpack.c.l.b16 %v1058
    %v1209 = vunpack.c.h.b16 %v1058
    %v1210 = vunpack.c.l.b16 %v1059
    %v1211 = vunpack.c.h.b16 %v1059
    %v1212 = vunpack.c.l.b16 %v1060
    %v1213 = vunpack.c.h.b16 %v1060
    %v1214 = vunpack.c.l.b16 %v1061
    %v1215 = vunpack.c.h.b16 %v1061
    %v1216 = vunpack.c.l.b16 %v1062
    %v1217 = vunpack.c.h.b16 %v1062
    %v1218 = vunpack.c.l.b16 %v1063
    %v1219 = vunpack.c.h.b16 %v1063
    %v1220 = vunpack.c.l.b16 %v1064
    %v1221 = vunpack.c.h.b16 %v1064
    %v1222 = vunpack.c.l.b16 %v1065
    %v1223 = vunpack.c.h.b16 %v1065
    %v1224 = vunpack.c.l.b16 %v1066
    %v1225 = vunpack.c.h.b16 %v1066
    %v1226 = vunpack.c.l.b16 %v1067
    %v1227 = vunpack.c.h.b16 %v1067
    %v1228 = vunpack.c.l.b16 %v1068
    %v1229 = vunpack.c.h.b16 %v1068
    %v1230 = vunpack.c.l.b16 %v1069
    %v1231 = vunpack.c.h.b16 %v1069
    %v1232 = vunpack.c.l.b16 %v1070
    %v1233 = vunpack.c.h.b16 %v1070
    %v1234 = vunpack.c.l.b16 %v1071
    %v1235 = vunpack.c.h.b16 %v1071
    %v1236 = vunpack.c.l.b16 %v1072
    %v1237 = vunpack.c.h.b16 %v1072
    %v1238 = vunpack.c.l.b16 %v1073
    %v1239 = vunpack.c.h.b16 %v1073
    %v1240 = vunpack.c.l.b16 %v1074
    %v1241 = vunpack.c.h.b16 %v1074
    %v1242 = vunpack.c.l.b16 %v1075
    %v1243 = vunpack.c.h.b16 %v1075
    %v1244 = vunpack.c.l.b16 %v1076
    %v1245 = vunpack.c.h.b16 %v1076
    %v1246 = vunpack.c.l.b16 %v1077
    %v1247 = vunpack.c.h.b16 %v1077
    %v1248 = vunpack.c.l.b16 %v1078
    %v1249 = vunpack.c.h.b16 %v1078
    %v1250 = vunpack.c.l.b16 %v1079
    %v1251 = vunpack.c.h.b16 %v1079
    %v1252 = vunpack.c.l.b16 %v1080
    %v1253 = vunpack.c.h.b16 %v1080
    %v1254 = vunpack.c.l.b16 %v1081
    %v1255 = vunpack.c.h.b16 %v1081
    %v1256 = vunpack.c.l.b16 %v1082
    %v1257 = vunpack.c.h.b16 %v1082
    %v1258 = vunpack.c.l.b16 %v1083
    %v1259 = vunpack.c.h.b16 %v1083
    %v1260 = vunpack.c.l.b16 %v1084
    %v1261 = vunpack.c.h.b16 %v1084
    %v1262 = vunpack.c.l.b16 %v1085
    %v1263 = vunpack.c.h.b16 %v1085
    %v1264 = vunpack.c.l.b16 %v1086
    %v1265 = vunpack.c.h.b16 %v1086
    %v1266 = vunpack.c.l.b16 %v1087
    %v1267 = vunpack.c.h.b16 %v1087
    %v1268 = vunpack.c.l.b16 %v1088
    %v1269 = vunpack.c.h.b16 %v1088
    %v1270 = vunpack.c.l.b16 %v1089
    %v1271 = vunpack.c.h.b16 %v1089
    %v1272 = vunpack.c.l.b16 %v1090
    %v1273 = vunpack.c.h.b16 %v1090
    %v1274 = vunpack.c.l.b16 %v1091
    %v1275 = vunpack.c.h.b16 %v1091
    %v1276 = vunpack.c.l.b16 %v1092
    %v1277 = vunpack.c.h.b16 %v1092
    %v1278 = vunpack.c.l.b16 %v1093
    %v1279 = vunpack.c.h.b16 %v1093
    %v1280 = vunpack.c.l.b16 %v1094
    %v1281 = vunpack.c.h.b16 %v1094
    %v1282 = vunpack.c.l.b16 %v1095
    %v1283 = vunpack.c.h.b16 %v1095
    %v1284 = vunpack.c.l.b16 %v1096
    %v1285 = vunpack.c.h.b16 %v1096
    %v1286 = vunpack.c.l.b16 %v1097
    %v1287 = vunpack.c.h.b16 %v1097
    %v1288 = vunpack.c.l.b16 %v1098
    %v1289 = vunpack.c.h.b16 %v1098
    %v1290 = vunpack.c.l.b16 %v1099
    %v1291 = vunpack.c.h.b16 %v1099
    %v1292 = vpack.c.b16 %v1172, %v1164
    %v1293 = vpack.c.b16 %v1173, %v1165
    %v1294 = vpack.c.b16 %v1174, %v1166
    %v1295 = vpack.c.b16 %v1175, %v1167
    %v1296 = vpack.c.b16 %v1176, %v1168
    %v1297 = vpack.c.b16 %v1177, %v1169
    %v1298 = vpack.c.b16 %v1178, %v1170
    %v1299 = vpack.c.b16 %v1179, %v1171
    %v1300 = vpack.c.b16 %v1188, %v1180
    %v1301 = vpack.c.b16 %v1189, %v1181
    %v1302 = vpack.c.b16 %v1190, %v1182
    %v1303 = vpack.c.b16 %v1191, %v1183
    %v1304 = vpack.c.b16 %v1192, %v1184
    %v1305 = vpack.c.b16 %v1193, %v1185
    %v1306 = vpack.c.b16 %v1194, %v1186
    %v1307 = vpack.c.b16 %v1195, %v1187
    %v1308 = vpack.c.b16 %v1204, %v1196
    %v1309 = vpack.c.b16 %v1205, %v1197
    %v1310 = vpack.c.b16 %v1206, %v1198
    %v1311 = vpack.c.b16 %v1207, %v1199
    %v1312 = vpack.c.b16 %v1208, %v1200
    %v1313 = vpack.c.b16 %v1209, %v1201
    %v1314 = vpack.c.b16 %v1210, %v1202
    %v1315 = vpack.c.b16 %v1211, %v1203
    %v1316 = vpack.c.b16 %v1220, %v1212
    %v1317 = vpack.c.b16 %v1221, %v1213
    %v1318 = vpack.c.b16 %v1222, %v1214
    %v1319 = vpack.c.b16 %v1223, %v1215
    %v1320 = vpack.c.b16 %v1224, %v1216
    %v1321 = vpack.c.b16 %v1225, %v1217
    %v1322 = vpack.c.b16 %v1226, %v1218
    %v1323 = vpack.c.b16 %v1227, %v1219
    %v1324 = vpack.c.b16 %v1236, %v1228
    %v1325 = vpack.c.b16 %v1237, %v1229
    %v1326 = vpack.c.b16 %v1238, %v1230
    %v1327 = vpack.c.b16 %v1239, %v1231
    %v1328 = vpack.c.b16 %v1240, %v1232
    %v1329 = vpack.c.b16 %v1241, %v1233
    %v1330 = vpack.c.b16 %v1242, %v1234
    %v1331 = vpack.c.b16 %v1243, %v1235
    %v1332 = vpack.c.b16 %v1252, %v1244
    %v1333 = vpack.c.b16 %v1253, %v1245
    %v1334 = vpack.c.b16 %v1254, %v1246
    %v1335 = vpack.c.b16 %v1255, %v1247
    %v1336 = vpack.c.b16 %v1256, %v1248
    %v1337 = vpack.c.b16 %v1257, %v1249
    %v1338 = vpack.c.b16 %v1258, %v1250
    %v1339 = vpack.c.b16 %v1259, %v1251
    %v1340 = vpack.c.b16 %v1268, %v1260
    %v1341 = vpack.c.b16 %v1269, %v1261
    %v1342 = vpack.c.b16 %v1270, %v1262
    %v1343 = vpack.c.b16 %v1271, %v1263
    %v1344 = vpack.c.b16 %v1272, %v1264
    %v1345 = vpack.c.b16 %v1273, %v1265
    %v1346 = vpack.c.b16 %v1274, %v1266
    %v1347 = vpack.c.b16 %v1275, %v1267
    %v1348 = vpack.c.b16 %v1284, %v1276
    %v1349 = vpack.c.b16 %v1285, %v1277
    %v1350 = vpack.c.b16 %v1286, %v1278
    %v1351 = vpack.c.b16 %v1287, %v1279
    %v1352 = vpack.c.b16 %v1288, %v1280
    %v1353 = vpack.c.b16 %v1289, %v1281
    %v1354 = vpack.c.b16 %v1290, %v1282
    %v1355 = vpack.c.b16 %v1291, %v1283
    %1420 = vmatprep.subr.bf16.mxu0 %v1293
    %1421 = vmatpush1.bf16.msra.mxu0 %v1292
    %1422 = vmatprep.subr.bf16.mxu0 %v1301
    %1423 = vmatpush1.bf16.msra.mxu0 %v1300
    %1424 = vmatprep.subr.bf16.mxu0 %v1309
    %1425 = vmatpush1.bf16.msra.mxu0 %v1308
    %1426 = vmatprep.subr.bf16.mxu0 %v1317
    %1427 = vmatpush1.bf16.msra.mxu0 %v1316
    %1428 = vmatprep.subr.bf16.mxu0 %v1325
    %1429 = vmatpush1.bf16.msra.mxu0 %v1324
    %1430 = vmatprep.subr.bf16.mxu0 %v1333
    %1431 = vmatpush1.bf16.msra.mxu0 %v1332
    %1432 = vmatprep.subr.bf16.mxu0 %v1341
    %1433 = vmatpush1.bf16.msra.mxu0 %v1340
    %1434 = vmatprep.subr.bf16.mxu0 %v1349
    %1435 = vmatpush1.bf16.msra.mxu0 %v1348
    %1436 = vmatprep.subr.bf16.mxu0 0
    %1437 = vmatpush1.bf16.msra.mxu0 0
    %1438 = vmatprep.subr.bf16.mxu0 0
    %1439 = vmatpush1.bf16.msra.mxu0 0
    %1440 = vmatprep.subr.bf16.mxu0 0
    %1441 = vmatpush1.bf16.msra.mxu0 0
    %1442 = vmatprep.subr.bf16.mxu0 0
    %1443 = vmatpush1.bf16.msra.mxu0 0
    %1444 = vmatprep.subr.bf16.mxu0 0
    %1445 = vmatpush1.bf16.msra.mxu0 0
    %1446 = vmatprep.subr.bf16.mxu0 0
    %1447 = vmatpush1.bf16.msra.mxu0 0
    %1448 = vmatprep.subr.bf16.mxu0 0
    %1449 = vmatpush1.bf16.msra.mxu0 0
    %1450 = vmatprep.subr.bf16.mxu0 0
    %1451 = vmatpush1.bf16.msra.mxu0 0
    %1452 = vmatprep.mubr.bf16.mxu0 0
    %1453 = vmatmul.mubr.bf16.gmra.mrb[0].mxu0 %v1035
    %v1454 = vpop.f32.mrb[0].mxu0
    %v1455 = vadd.f32 0.0, %v1454
    %v1456 = vpop.f32.mrb[0].mxu0
    %v1457 = vadd.f32 0.0, %v1456
    %v1458 = vpop.f32.mrb[0].mxu0
    %v1459 = vpop.f32.mrb[0].mxu0
    %1460 = vdwg.mxu0
    %1461 = vmatprep.subr.bf16.mxu0 %v1295
    %1462 = vmatpush1.bf16.msra.mxu0 %v1294
    %1463 = vmatprep.subr.bf16.mxu0 %v1303
    %1464 = vmatpush1.bf16.msra.mxu0 %v1302
    %1465 = vmatprep.subr.bf16.mxu0 %v1311
    %1466 = vmatpush1.bf16.msra.mxu0 %v1310
    %1467 = vmatprep.subr.bf16.mxu0 %v1319
    %1468 = vmatpush1.bf16.msra.mxu0 %v1318
    %1469 = vmatprep.subr.bf16.mxu0 %v1327
    %1470 = vmatpush1.bf16.msra.mxu0 %v1326
    %1471 = vmatprep.subr.bf16.mxu0 %v1335
    %1472 = vmatpush1.bf16.msra.mxu0 %v1334
    %1473 = vmatprep.subr.bf16.mxu0 %v1343
    %1474 = vmatpush1.bf16.msra.mxu0 %v1342
    %1475 = vmatprep.subr.bf16.mxu0 %v1351
    %1476 = vmatpush1.bf16.msra.mxu0 %v1350
    %1477 = vmatprep.subr.bf16.mxu0 0
    %1478 = vmatpush1.bf16.msra.mxu0 0
    %1479 = vmatprep.subr.bf16.mxu0 0
    %1480 = vmatpush1.bf16.msra.mxu0 0
    %1481 = vmatprep.subr.bf16.mxu0 0
    %1482 = vmatpush1.bf16.msra.mxu0 0
    %1483 = vmatprep.subr.bf16.mxu0 0
    %1484 = vmatpush1.bf16.msra.mxu0 0
    %1485 = vmatprep.subr.bf16.mxu0 0
    %1486 = vmatpush1.bf16.msra.mxu0 0
    %1487 = vmatprep.subr.bf16.mxu0 0
    %1488 = vmatpush1.bf16.msra.mxu0 0
    %1489 = vmatprep.subr.bf16.mxu0 0
    %1490 = vmatpush1.bf16.msra.mxu0 0
    %1491 = vmatprep.subr.bf16.mxu0 0
    %1492 = vmatpush1.bf16.msra.mxu0 0
    %1493 = vmatprep.mubr.bf16.mxu0 0
    %1494 = vmatmul.mubr.bf16.gmra.mrb[0].mxu0 %v1035
    %v1495 = vpop.f32.mrb[0].mxu0
    %v1496 = vadd.f32 0.0, %v1495
    %v1497 = vpop.f32.mrb[0].mxu0
    %v1498 = vadd.f32 0.0, %v1497
    %v1499 = vpop.f32.mrb[0].mxu0
    %v1500 = vpop.f32.mrb[0].mxu0
    %1501 = vdwg.mxu0
    %1502 = vmatprep.subr.bf16.mxu0 %v1297
    %1503 = vmatpush1.bf16.msra.mxu0 %v1296
    %1504 = vmatprep.subr.bf16.mxu0 %v1305
    %1505 = vmatpush1.bf16.msra.mxu0 %v1304
    %1506 = vmatprep.subr.bf16.mxu0 %v1313
    %1507 = vmatpush1.bf16.msra.mxu0 %v1312
    %1508 = vmatprep.subr.bf16.mxu0 %v1321
    %1509 = vmatpush1.bf16.msra.mxu0 %v1320
    %1510 = vmatprep.subr.bf16.mxu0 %v1329
    %1511 = vmatpush1.bf16.msra.mxu0 %v1328
    %1512 = vmatprep.subr.bf16.mxu0 %v1337
    %1513 = vmatpush1.bf16.msra.mxu0 %v1336
    %1514 = vmatprep.subr.bf16.mxu0 %v1345
    %1515 = vmatpush1.bf16.msra.mxu0 %v1344
    %1516 = vmatprep.subr.bf16.mxu0 %v1353
    %1517 = vmatpush1.bf16.msra.mxu0 %v1352
    %1518 = vmatprep.subr.bf16.mxu0 0
    %1519 = vmatpush1.bf16.msra.mxu0 0
    %1520 = vmatprep.subr.bf16.mxu0 0
    %1521 = vmatpush1.bf16.msra.mxu0 0
    %1522 = vmatprep.subr.bf16.mxu0 0
    %1523 = vmatpush1.bf16.msra.mxu0 0
    %1524 = vmatprep.subr.bf16.mxu0 0
    %1525 = vmatpush1.bf16.msra.mxu0 0
    %1526 = vmatprep.subr.bf16.mxu0 0
    %1527 = vmatpush1.bf16.msra.mxu0 0
    %1528 = vmatprep.subr.bf16.mxu0 0
    %1529 = vmatpush1.bf16.msra.mxu0 0
    %1530 = vmatprep.subr.bf16.mxu0 0
    %1531 = vmatpush1.bf16.msra.mxu0 0
    %1532 = vmatprep.subr.bf16.mxu0 0
    %1533 = vmatpush1.bf16.msra.mxu0 0
    %1534 = vmatprep.mubr.bf16.mxu0 0
    %1535 = vmatmul.mubr.bf16.gmra.mrb[0].mxu0 %v1035
    %v1536 = vpop.f32.mrb[0].mxu0
    %v1537 = vadd.f32 0.0, %v1536
    %v1538 = vpop.f32.mrb[0].mxu0
    %v1539 = vadd.f32 0.0, %v1538
    %v1540 = vpop.f32.mrb[0].mxu0
    %v1541 = vpop.f32.mrb[0].mxu0
    %1542 = vdwg.mxu0
    %1543 = vmatprep.subr.bf16.mxu0 %v1299
    %1544 = vmatpush1.bf16.msra.mxu0 %v1298
    %1545 = vmatprep.subr.bf16.mxu0 %v1307
    %1546 = vmatpush1.bf16.msra.mxu0 %v1306
    %1547 = vmatprep.subr.bf16.mxu0 %v1315
    %1548 = vmatpush1.bf16.msra.mxu0 %v1314
    %1549 = vmatprep.subr.bf16.mxu0 %v1323
    %1550 = vmatpush1.bf16.msra.mxu0 %v1322
    %1551 = vmatprep.subr.bf16.mxu0 %v1331
    %1552 = vmatpush1.bf16.msra.mxu0 %v1330
    %1553 = vmatprep.subr.bf16.mxu0 %v1339
    %1554 = vmatpush1.bf16.msra.mxu0 %v1338
    %1555 = vmatprep.subr.bf16.mxu0 %v1347
    %1556 = vmatpush1.bf16.msra.mxu0 %v1346
    %1557 = vmatprep.subr.bf16.mxu0 %v1355
    %1558 = vmatpush1.bf16.msra.mxu0 %v1354
    %1559 = vmatprep.subr.bf16.mxu0 0
    %1560 = vmatpush1.bf16.msra.mxu0 0
    %1561 = vmatprep.subr.bf16.mxu0 0
    %1562 = vmatpush1.bf16.msra.mxu0 0
    %1563 = vmatprep.subr.bf16.mxu0 0
    %1564 = vmatpush1.bf16.msra.mxu0 0
    %1565 = vmatprep.subr.bf16.mxu0 0
    %1566 = vmatpush1.bf16.msra.mxu0 0
    %1567 = vmatprep.subr.bf16.mxu0 0
    %1568 = vmatpush1.bf16.msra.mxu0 0
    %1569 = vmatprep.subr.bf16.mxu0 0
    %1570 = vmatpush1.bf16.msra.mxu0 0
    %1571 = vmatprep.subr.bf16.mxu0 0
    %1572 = vmatpush1.bf16.msra.mxu0 0
    %1573 = vmatprep.subr.bf16.mxu0 0
    %1574 = vmatpush1.bf16.msra.mxu0 0
    %1575 = vmatprep.mubr.bf16.mxu0 0
    %1576 = vmatmul.mubr.bf16.gmra.mrb[0].mxu0 %v1035
    %v1577 = vpop.f32.mrb[0].mxu0
    %v1578 = vadd.f32 0.0, %v1577
    %v1579 = vpop.f32.mrb[0].mxu0
    %v1580 = vadd.f32 0.0, %v1579
    %v1581 = vpop.f32.mrb[0].mxu0
    %v1582 = vpop.f32.mrb[0].mxu0
    %1583 = vdwg.mxu0
    %1584 = vst [vmem:[#allocation11] sm:$0xff] %v1455
    %1585 = vst [vmem:[#allocation11 + $0x8] sm:$0xff] %v1457
    %1586 = vst [vmem:[#allocation11 + $0x10] sm:$0xff] %v1496
    %1587 = vst [vmem:[#allocation11 + $0x18] sm:$0xff] %v1498
    %1588 = vst [vmem:[#allocation11 + $0x20] sm:$0xff] %v1537
    %1589 = vst [vmem:[#allocation11 + $0x28] sm:$0xff] %v1539
    %1590 = vst [vmem:[#allocation11 + $0x30] sm:$0xff] %v1578
    %1591 = vst [vmem:[#allocation11 + $0x38] sm:$0xff] %v1580
    // Predicated region
    $region54: #{tpu_custom_call.1} parent=1 // pred_check
      _
    $region55: #{tpu_custom_call.1} parent=1 // pred_check_branch
      %1593 = sbr.rel (0) target = $region57
    $region56: #{tpu_custom_call.1} parent=1 // pred_region
      %s1595 = ssub.s32 1024, 1024
      %1596 = vsyncadd [#allocation4], %s1595
      %s1598 = sshll.u32 [#allocation11], 4
      %s1599 = int_to_ptr.vmem [resolvable:$true] %s1598
      %1601 = dma.vmem_to_hbm [thread:$0]  %s1599, 1024, %s8, [#allocation4]
    $region57: #{tpu_custom_call.1} parent=1 // pred_fallthru
      _
    // Predicated region
    $region58: #{tpu_custom_call.1} parent=1 // pred_check
      _
    $region59: #{tpu_custom_call.1} parent=1 // pred_check_branch
      %1603 = sbr.rel (0) target = $region61
    $region60: #{tpu_custom_call.1} parent=1 // pred_region
      %1604 = dma.done [#allocation4], 1024
    $region61: #{tpu_custom_call.1} parent=1 // pred_fallthru
      _
    %1605 = vsyncpa [#allocation3], 1
    %1606 = vsyncpa [#allocation6], 1
    %1607 = vsyncpa [#allocation9], 1
    %1608 = vsyncpa [#allocation4], 1

</llo_original>
